<compile_context>
chip_gen: v7x
topology: tpu7x:2x2x1
jax: 0.10.0
libtpu: 0.0.40
codegen_flags: <defaults>
</compile_context>

<pallas_src>
import functools

import jax
import jax.numpy as jnp
import numpy as np
from jax.experimental import pallas as pl
from jax.experimental.pallas import tpu as pltpu


def a3c_stacked_lstm_kernel(dyn_ref, w_ref, out_ref, *,
                            layout, T, obs_dim, H, A, state_base):
    """dyn_ref: (T_pad + 8, 128) packed dynamic inputs; w_ref: (R, 128) packed
    weights; out_ref: (8, OW) packed outputs.  `layout[name] = (row_off, nrows,
    ncols)` with row_off always a multiple of 8 (python ints -> static views)."""
    f32 = jnp.float32

    def wv(name):
        r0, nr, nc = layout[name]
        return w_ref[r0:r0 + nr, 0:nc]

    ew1, eb1 = wv("ew1"), wv("eb1")
    ew2, eb2 = wv("ew2"), wv("eb2")
    w_ih1, w_hh1, b1 = wv("w_ih1"), wv("w_hh1"), wv("b1")
    w2h, w2ar = wv("w2h"), wv("w2ar")
    w_hh2, b2 = wv("w_hh2"), wv("b2")
    head_w, head_b = wv("head_w"), wv("head_b")

    sb = state_base
    obs = dyn_ref[0:T, 0:obs_dim]                       # (T, 9)
    h1 = dyn_ref[sb + 0:sb + 1, 0:H]                    # (1, H)
    c1 = dyn_ref[sb + 1:sb + 2, 0:H]
    h20 = dyn_ref[sb + 2:sb + 3, 0:H]
    c20 = dyn_ref[sb + 3:sb + 4, 0:H]
    pa_pr = dyn_ref[sb + 4:sb + 5, 0:A + 1]             # (1, A+1) = [p_action | p_reward]

    # ---- encoder: Linear(9,64) -> ReLU -> Linear(64,128) -> ReLU ----
    z1 = jnp.maximum(jnp.dot(obs, ew1, preferred_element_type=f32) + eb1, 0.0)
    feats = jnp.maximum(jnp.dot(z1, ew2, preferred_element_type=f32) + eb2, 0.0)

    def lstm_cell(x_gates, h, c, w_hh):
        # bias already folded into x_gates (off the serial critical path)
        gates = x_gates + jnp.dot(h, w_hh, preferred_element_type=f32)
        sg = jax.nn.sigmoid(gates)   # one full-width (1,4H) EUP pass
        tg = jnp.tanh(gates)         # one full-width (1,4H) EUP pass
        i = sg[:, 0 * H:1 * H]
        f = sg[:, 1 * H:2 * H]
        g = tg[:, 2 * H:3 * H]
        o = sg[:, 3 * H:4 * H]
        c_new = f * c + i * g
        h_new = o * jnp.tanh(c_new)
        return h_new, c_new

    # ---- off-critical-path work: input-gate contributions + biases ----
    xg_all = jnp.dot(feats, w_ih1, preferred_element_type=f32) + b1        # (T, 4H)
    xg2_const = jnp.dot(pa_pr, w2ar, preferred_element_type=f32) + b2      # (1, 4H)

    # ---- lstm_1 over T timesteps (batch = 1), statically unrolled (serial) ----
    for t in range(T):
        h1, c1 = lstm_cell(xg_all[t:t + 1, :], h1, c1, w_hh1)

    # ---- lstm_2: one step; only the h1-dependent matmul sits after the loop ----
    xg2 = jnp.dot(h1, w2h, preferred_element_type=f32) + xg2_const
    h2, c2 = lstm_cell(xg2, h20, c20, w_hh2)

    # ---- fused actor + critic head: (1, A+1) = [logits | value] ----
    head = jnp.dot(h2, head_w, preferred_element_type=f32) + head_b

    # ---- assemble one (8, OW) value; single unmasked full-tile store ----
    OW = out_ref.shape[1]

    def lane_pad(x):
        if x.shape[1] == OW:
            return x
        return jnp.concatenate(
            [x, jnp.zeros((x.shape[0], OW - x.shape[1]), f32)], axis=1)

    out_ref[...] = jnp.concatenate(
        [lane_pad(h1), lane_pad(c1), lane_pad(h2), lane_pad(c2),
         lane_pad(head), jnp.zeros((3, OW), f32)], axis=0)


def pack_params(params):
    """Pack all weights/biases into one lane-dense (rows, 128) f32 slab.

    Every entry's row block is padded up to a multiple of 8 rows so each
    in-kernel view starts on a sublane-tile boundary (zero-cost windows).
    Returns (slab, layout) with layout[name] = (row_offset, nrows, ncols)."""
    head_w = jnp.concatenate([params["aw"], params["cw"]], axis=1)   # (H, A+1)
    head_b = jnp.concatenate([params["ab"], params["cb"]], axis=1)   # (1, A+1)
    # lstm_2 x-side: rows = [w2a (A rows); w2r (1 row)] matching [p_action|p_reward]
    w2ar = jnp.concatenate([params["w2a"], params["w2r"]], axis=0)   # (A+1, 4H)
    entries = [
        ("ew1", params["ew1"]), ("eb1", params["eb1"]),
        ("ew2", params["ew2"]), ("eb2", params["eb2"]),
        ("w_ih1", params["w_ih1"]), ("w_hh1", params["w_hh1"]), ("b1", params["b1"]),
        ("w2h", params["w2h"]), ("w2ar", w2ar),
        ("w_hh2", params["w_hh2"]), ("b2", params["b2"]),
        ("head_w", head_w), ("head_b", head_b),
    ]
    max_cols = max(int(a.shape[1]) for _, a in entries)
    WW = 128 * pl.cdiv(max_cols, 128)                 # lane-dense slab width
    blocks, layout, r = [], {}, 0
    for name, a in entries:
        nr, nc = int(a.shape[0]), int(a.shape[1])
        nr_pad = 8 * pl.cdiv(nr, 8)                   # 8-row (sublane) alignment
        layout[name] = (r, nr, nc)
        block = jnp.zeros((nr_pad, WW), jnp.float32)
        block = block.at[:nr, :nc].set(a.astype(jnp.float32))
        blocks.append(block)
        r += nr_pad
    slab = jnp.concatenate(blocks, axis=0)            # (r, WW), r % 8 == 0
    return slab, layout


def a3c_forward(obs, p_action, p_reward, state_1, state_2, w_slab, layout,
                *, hidden, num_actions):
    """Pallas wrapper.  Returns (action_logits, value, (h1, c1), (h2, c2))
    with PyTorch output shapes (1, 1, ...)."""
    T, obs_dim = obs.shape
    H, A = hidden, num_actions
    DW = 128                                           # lane-dense input slab
    T_pad = 8 * pl.cdiv(T, 8)                          # state rows 8-aligned

    def lane_pad(x):
        x = x.astype(jnp.float32)
        return jnp.pad(x, ((0, 0), (0, DW - x.shape[1])))

    pa_pr = jnp.concatenate([p_action.astype(jnp.float32),
                             p_reward.astype(jnp.float32)], axis=1)  # (1, A+1)

    obs_block = jnp.pad(obs.astype(jnp.float32),
                        ((0, T_pad - T), (0, DW - obs_dim)))          # (T_pad, DW)
    state_block = jnp.concatenate(
        [lane_pad(state_1[0]), lane_pad(state_1[1]),
         lane_pad(state_2[0]), lane_pad(state_2[1]),
         lane_pad(pa_pr), jnp.zeros((3, DW), jnp.float32)], axis=0)   # (8, DW)
    dyn = jnp.concatenate([obs_block, state_block], axis=0)           # (T_pad+8, DW)

    OW = 128 * pl.cdiv(max(H, A + 1), 128)
    out = pl.pallas_call(
        functools.partial(a3c_stacked_lstm_kernel, layout=layout,
                          T=T, obs_dim=obs_dim, H=H, A=A, state_base=T_pad),
        out_shape=jax.ShapeDtypeStruct((8, OW), jnp.float32),
        in_specs=[pl.BlockSpec(memory_space=pltpu.MemorySpace.VMEM),
                  pl.BlockSpec(memory_space=pltpu.MemorySpace.VMEM)],
        out_specs=pl.BlockSpec(memory_space=pltpu.MemorySpace.VMEM),
    )(dyn, w_slab)

    h1, c1 = out[0:1, 0:H], out[1:2, 0:H]
    h2, c2 = out[2:3, 0:H], out[3:4, 0:H]
    logits, value = out[4:5, 0:A], out[4:5, A:A + 1]
    return (logits.reshape(1, 1, A), value.reshape(1, 1, 1),
            (h1.reshape(1, 1, H), c1.reshape(1, 1, H)),
            (h2.reshape(1, 1, H), c2.reshape(1, 1, H)))


def a3c_forward_ref(obs, p_action, p_reward, state_1, state_2, params):
    """Pure-JAX reference for correctness checking."""
    H = state_1[0].shape[-1]

    def cell(x_gates, h, c, w_hh, b):
        gates = x_gates + h @ w_hh + b
        i = jax.nn.sigmoid(gates[:, 0 * H:1 * H])
        f = jax.nn.sigmoid(gates[:, 1 * H:2 * H])
        g = jnp.tanh(gates[:, 2 * H:3 * H])
        o = jax.nn.sigmoid(gates[:, 3 * H:4 * H])
        c = f * c + i * g
        return o * jnp.tanh(c), c

    feats = jnp.maximum(obs @ params["ew1"] + params["eb1"], 0.0)
    feats = jnp.maximum(feats @ params["ew2"] + params["eb2"], 0.0)
    xg_all = feats @ params["w_ih1"]
    h1, c1 = state_1
    for t in range(obs.shape[0]):
        h1, c1 = cell(xg_all[t:t + 1], h1, c1, params["w_hh1"], params["b1"])
    xg2 = h1 @ params["w2h"] + p_reward @ params["w2r"] + p_action @ params["w2a"]
    h2, c2 = cell(xg2, state_2[0], state_2[1], params["w_hh2"], params["b2"])
    logits = h2 @ params["aw"] + params["ab"]
    value = h2 @ params["cw"] + params["cb"]
    return logits, value, (h1, c1), (h2, c2)


def init_params(key, hidden, num_actions):
    feat_dim = 128
    ks = jax.random.split(key, 16)

    def w(k, shape, fan_in):
        return (jax.random.normal(k, shape, jnp.float32) / np.sqrt(fan_in)).astype(jnp.float32)

    params = {
        # encoder
        "ew1": w(ks[0], (9, 64), 9), "eb1": w(ks[1], (1, 64), 9),
        "ew2": w(ks[2], (64, feat_dim), 64), "eb2": w(ks[3], (1, feat_dim), 64),
        # lstm_1 (gate order i, f, g, o)
        "w_ih1": w(ks[4], (feat_dim, 4 * hidden), hidden),
        "w_hh1": w(ks[5], (hidden, 4 * hidden), hidden),
        "b1": w(ks[6], (1, 4 * hidden), hidden),      # b_ih + b_hh folded
        # lstm_2: input = [h1 | p_reward | p_action], split by source
        "w2h": w(ks[7], (hidden, 4 * hidden), hidden),
        "w2r": w(ks[8], (1, 4 * hidden), hidden),
        "w2a": w(ks[9], (num_actions, 4 * hidden), hidden),
        "w_hh2": w(ks[10], (hidden, 4 * hidden), hidden),
        "b2": w(ks[11], (1, 4 * hidden), hidden),
        # actor (gain 0.01, zero bias) / critic (gain 1.0, zero bias)
        # TODO(synk): true orthogonal init not reproduced; deterministic scaled normal instead.
        "aw": 0.01 * w(ks[12], (hidden, num_actions), hidden),
        "ab": jnp.zeros((1, num_actions), jnp.float32),
        "cw": w(ks[13], (hidden, 1), hidden),
        "cb": jnp.zeros((1, 1), jnp.float32),
    }
    return params


if __name__ == "__main__":
    key = jax.random.PRNGKey(0)
    k_obs, k_act, k_rew, k_par = jax.random.split(key, 4)

    T_len, hidden, num_actions = 8, 32, 4

    obs = jax.random.normal(k_obs, (T_len, 9), jnp.float32)
    p_action = jax.nn.one_hot(jax.random.randint(k_act, (1,), 0, num_actions),
                              num_actions, dtype=jnp.float32)          # (1, A)
    p_reward = jax.random.normal(k_rew, (1, 1), jnp.float32)           # (1, 1)

    # get_init_states -> zeros of shape (1, 1, hidden); batch dim folded to (1, hidden)
    state_1 = (jnp.zeros((1, hidden), jnp.float32), jnp.zeros((1, hidden), jnp.float32))
    state_2 = (jnp.zeros((1, hidden), jnp.float32), jnp.zeros((1, hidden), jnp.float32))

    params = init_params(k_par, hidden, num_actions)
    w_slab, layout = pack_params(params)        # one-time weight packing

    out = a3c_forward(obs, p_action, p_reward, state_1, state_2, w_slab, layout,
                      hidden=hidden, num_actions=num_actions)
    out = jax.block_until_ready(out)
    logits, value, (h1, c1), (h2, c2) = out

    # correctness check vs pure-JAX reference (all six outputs)
    r_logits, r_value, (rh1, rc1), (rh2, rc2) = a3c_forward_ref(
        obs, p_action, p_reward, state_1, state_2, params)
    np.testing.assert_allclose(np.asarray(logits).reshape(1, -1), np.asarray(r_logits),
                               rtol=1e-5, atol=1e-5)
    np.testing.assert_allclose(np.asarray(value).reshape(1, 1), np.asarray(r_value),
                               rtol=1e-5, atol=1e-5)
    np.testing.assert_allclose(np.asarray(h1).reshape(1, -1), np.asarray(rh1),
                               rtol=1e-5, atol=1e-5)
    np.testing.assert_allclose(np.asarray(c1).reshape(1, -1), np.asarray(rc1),
                               rtol=1e-5, atol=1e-5)
    np.testing.assert_allclose(np.asarray(h2).reshape(1, -1), np.asarray(rh2),
                               rtol=1e-5, atol=1e-5)
    np.testing.assert_allclose(np.asarray(c2).reshape(1, -1), np.asarray(rc2),
                               rtol=1e-5, atol=1e-5)

    print("KERNEL_OK")
</pallas_src>

<mosaic_0001>
module attributes {stable_mosaic.version = 11 : i64} {
  func.func @a3c_stacked_lstm_kernel(%arg0: memref<16x128xf32, #tpu.memory_space<vmem>>, %arg1: memref<384x128xf32, #tpu.memory_space<vmem>>, %arg2: memref<8x128xf32, #tpu.memory_space<vmem>>) attributes {dimension_semantics = [], scalar_prefetch = 0 : i64, scratch_operands = 0 : i64, tpu.core_type = #tpu.core_type<tc>} {
    %c0 = arith.constant 0 : index
    %c0_0 = arith.constant 0 : index
    %0 = vector.load %arg1[%c0, %c0_0] : memref<384x128xf32, #tpu.memory_space<vmem>>, vector<9x64xf32>
    %c16 = arith.constant 16 : index
    %c0_1 = arith.constant 0 : index
    %1 = vector.load %arg1[%c16, %c0_1] : memref<384x128xf32, #tpu.memory_space<vmem>>, vector<1x64xf32>
    %c24 = arith.constant 24 : index
    %c0_2 = arith.constant 0 : index
    %2 = vector.load %arg1[%c24, %c0_2] : memref<384x128xf32, #tpu.memory_space<vmem>>, vector<64x128xf32>
    %c88 = arith.constant 88 : index
    %c0_3 = arith.constant 0 : index
    %3 = vector.load %arg1[%c88, %c0_3] : memref<384x128xf32, #tpu.memory_space<vmem>>, vector<1x128xf32>
    %c96 = arith.constant 96 : index
    %c0_4 = arith.constant 0 : index
    %4 = vector.load %arg1[%c96, %c0_4] : memref<384x128xf32, #tpu.memory_space<vmem>>, vector<128x128xf32>
    %c224 = arith.constant 224 : index
    %c0_5 = arith.constant 0 : index
    %5 = vector.load %arg1[%c224, %c0_5] : memref<384x128xf32, #tpu.memory_space<vmem>>, vector<32x128xf32>
    %c256 = arith.constant 256 : index
    %c0_6 = arith.constant 0 : index
    %6 = vector.load %arg1[%c256, %c0_6] : memref<384x128xf32, #tpu.memory_space<vmem>>, vector<1x128xf32>
    %c264 = arith.constant 264 : index
    %c0_7 = arith.constant 0 : index
    %7 = vector.load %arg1[%c264, %c0_7] : memref<384x128xf32, #tpu.memory_space<vmem>>, vector<32x128xf32>
    %c296 = arith.constant 296 : index
    %c0_8 = arith.constant 0 : index
    %8 = vector.load %arg1[%c296, %c0_8] : memref<384x128xf32, #tpu.memory_space<vmem>>, vector<5x128xf32>
    %c304 = arith.constant 304 : index
    %c0_9 = arith.constant 0 : index
    %9 = vector.load %arg1[%c304, %c0_9] : memref<384x128xf32, #tpu.memory_space<vmem>>, vector<32x128xf32>
    %c336 = arith.constant 336 : index
    %c0_10 = arith.constant 0 : index
    %10 = vector.load %arg1[%c336, %c0_10] : memref<384x128xf32, #tpu.memory_space<vmem>>, vector<1x128xf32>
    %c344 = arith.constant 344 : index
    %c0_11 = arith.constant 0 : index
    %11 = vector.load %arg1[%c344, %c0_11] : memref<384x128xf32, #tpu.memory_space<vmem>>, vector<32x5xf32>
    %c376 = arith.constant 376 : index
    %c0_12 = arith.constant 0 : index
    %12 = vector.load %arg1[%c376, %c0_12] : memref<384x128xf32, #tpu.memory_space<vmem>>, vector<1x5xf32>
    %c0_13 = arith.constant 0 : index
    %c0_14 = arith.constant 0 : index
    %13 = vector.load %arg0[%c0_13, %c0_14] : memref<16x128xf32, #tpu.memory_space<vmem>>, vector<8x9xf32>
    %c8 = arith.constant 8 : index
    %c0_15 = arith.constant 0 : index
    %14 = vector.load %arg0[%c8, %c0_15] : memref<16x128xf32, #tpu.memory_space<vmem>>, vector<1x32xf32>
    %c9 = arith.constant 9 : index
    %c0_16 = arith.constant 0 : index
    %15 = vector.load %arg0[%c9, %c0_16] : memref<16x128xf32, #tpu.memory_space<vmem>>, vector<1x32xf32>
    %c10 = arith.constant 10 : index
    %c0_17 = arith.constant 0 : index
    %16 = vector.load %arg0[%c10, %c0_17] : memref<16x128xf32, #tpu.memory_space<vmem>>, vector<1x32xf32>
    %c11 = arith.constant 11 : index
    %c0_18 = arith.constant 0 : index
    %17 = vector.load %arg0[%c11, %c0_18] : memref<16x128xf32, #tpu.memory_space<vmem>>, vector<1x32xf32>
    %c12 = arith.constant 12 : index
    %c0_19 = arith.constant 0 : index
    %18 = vector.load %arg0[%c12, %c0_19] : memref<16x128xf32, #tpu.memory_space<vmem>>, vector<1x5xf32>
    %cst = arith.constant dense<0.000000e+00> : vector<8x64xf32>
    %19 = tpu.matmul %13, %0, %cst {dimension_numbers = #tpu.dot_dimension_numbers<[1], [0], [0], [1], [0, 0, 1, 1], [], []>} : vector<8x9xf32>, vector<9x64xf32>, vector<8x64xf32> -> vector<8x64xf32>
    %20 = vector.broadcast %1 : vector<1x64xf32> to vector<8x64xf32>
    %21 = arith.addf %19, %20 : vector<8x64xf32>
    %cst_20 = arith.constant 0.000000e+00 : f32
    %22 = vector.broadcast %cst_20 : f32 to vector<8x64xf32>
    %23 = arith.maximumf %21, %22 : vector<8x64xf32>
    %cst_21 = arith.constant dense<0.000000e+00> : vector<8x128xf32>
    %24 = tpu.matmul %23, %2, %cst_21 {dimension_numbers = #tpu.dot_dimension_numbers<[1], [0], [0], [1], [0, 0, 1, 1], [], []>} : vector<8x64xf32>, vector<64x128xf32>, vector<8x128xf32> -> vector<8x128xf32>
    %25 = vector.broadcast %3 : vector<1x128xf32> to vector<8x128xf32>
    %26 = arith.addf %24, %25 : vector<8x128xf32>
    %cst_22 = arith.constant 0.000000e+00 : f32
    %27 = vector.broadcast %cst_22 : f32 to vector<8x128xf32>
    %28 = arith.maximumf %26, %27 : vector<8x128xf32>
    %cst_23 = arith.constant dense<0.000000e+00> : vector<8x128xf32>
    %29 = tpu.matmul %28, %4, %cst_23 {dimension_numbers = #tpu.dot_dimension_numbers<[1], [0], [0], [1], [0, 0, 1, 1], [], []>} : vector<8x128xf32>, vector<128x128xf32>, vector<8x128xf32> -> vector<8x128xf32>
    %30 = vector.broadcast %6 : vector<1x128xf32> to vector<8x128xf32>
    %31 = arith.addf %29, %30 : vector<8x128xf32>
    %cst_24 = arith.constant dense<0.000000e+00> : vector<1x128xf32>
    %32 = tpu.matmul %18, %8, %cst_24 {dimension_numbers = #tpu.dot_dimension_numbers<[1], [0], [0], [1], [0, 0, 1, 1], [], []>} : vector<1x5xf32>, vector<5x128xf32>, vector<1x128xf32> -> vector<1x128xf32>
    %33 = arith.addf %32, %10 : vector<1x128xf32>
    %34 = vector.extract_strided_slice %31 {offsets = [0, 0], sizes = [1, 128], strides = [1, 1]} : vector<8x128xf32> to vector<1x128xf32>
    %cst_25 = arith.constant dense<0.000000e+00> : vector<1x128xf32>
    %35 = tpu.matmul %14, %5, %cst_25 {dimension_numbers = #tpu.dot_dimension_numbers<[1], [0], [0], [1], [0, 0, 1, 1], [], []>} : vector<1x32xf32>, vector<32x128xf32>, vector<1x128xf32> -> vector<1x128xf32>
    %36 = arith.addf %34, %35 : vector<1x128xf32>
    %37 = arith.negf %36 : vector<1x128xf32>
    %38 = math.exp %37 : vector<1x128xf32>
    %cst_26 = arith.constant 1.000000e+00 : f32
    %39 = vector.broadcast %cst_26 : f32 to vector<1x128xf32>
    %40 = arith.addf %39, %38 : vector<1x128xf32>
    %41 = arith.divf %39, %40 : vector<1x128xf32>
    %42 = math.tanh %36 : vector<1x128xf32>
    %43 = vector.extract_strided_slice %41 {offsets = [0, 0], sizes = [1, 32], strides = [1, 1]} : vector<1x128xf32> to vector<1x32xf32>
    %44 = vector.extract_strided_slice %41 {offsets = [0, 32], sizes = [1, 32], strides = [1, 1]} : vector<1x128xf32> to vector<1x32xf32>
    %45 = vector.extract_strided_slice %42 {offsets = [0, 64], sizes = [1, 32], strides = [1, 1]} : vector<1x128xf32> to vector<1x32xf32>
    %46 = vector.extract_strided_slice %41 {offsets = [0, 96], sizes = [1, 32], strides = [1, 1]} : vector<1x128xf32> to vector<1x32xf32>
    %47 = arith.mulf %44, %15 : vector<1x32xf32>
    %48 = arith.mulf %43, %45 : vector<1x32xf32>
    %49 = arith.addf %47, %48 : vector<1x32xf32>
    %50 = math.tanh %49 : vector<1x32xf32>
    %51 = arith.mulf %46, %50 : vector<1x32xf32>
    %52 = vector.extract_strided_slice %31 {offsets = [1, 0], sizes = [1, 128], strides = [1, 1]} : vector<8x128xf32> to vector<1x128xf32>
    %cst_27 = arith.constant dense<0.000000e+00> : vector<1x128xf32>
    %53 = tpu.matmul %51, %5, %cst_27 {dimension_numbers = #tpu.dot_dimension_numbers<[1], [0], [0], [1], [0, 0, 1, 1], [], []>} : vector<1x32xf32>, vector<32x128xf32>, vector<1x128xf32> -> vector<1x128xf32>
    %54 = arith.addf %52, %53 : vector<1x128xf32>
    %55 = arith.negf %54 : vector<1x128xf32>
    %56 = math.exp %55 : vector<1x128xf32>
    %cst_28 = arith.constant 1.000000e+00 : f32
    %57 = vector.broadcast %cst_28 : f32 to vector<1x128xf32>
    %58 = arith.addf %57, %56 : vector<1x128xf32>
    %59 = arith.divf %57, %58 : vector<1x128xf32>
    %60 = math.tanh %54 : vector<1x128xf32>
    %61 = vector.extract_strided_slice %59 {offsets = [0, 0], sizes = [1, 32], strides = [1, 1]} : vector<1x128xf32> to vector<1x32xf32>
    %62 = vector.extract_strided_slice %59 {offsets = [0, 32], sizes = [1, 32], strides = [1, 1]} : vector<1x128xf32> to vector<1x32xf32>
    %63 = vector.extract_strided_slice %60 {offsets = [0, 64], sizes = [1, 32], strides = [1, 1]} : vector<1x128xf32> to vector<1x32xf32>
    %64 = vector.extract_strided_slice %59 {offsets = [0, 96], sizes = [1, 32], strides = [1, 1]} : vector<1x128xf32> to vector<1x32xf32>
    %65 = arith.mulf %62, %49 : vector<1x32xf32>
    %66 = arith.mulf %61, %63 : vector<1x32xf32>
    %67 = arith.addf %65, %66 : vector<1x32xf32>
    %68 = math.tanh %67 : vector<1x32xf32>
    %69 = arith.mulf %64, %68 : vector<1x32xf32>
    %70 = vector.extract_strided_slice %31 {offsets = [2, 0], sizes = [1, 128], strides = [1, 1]} : vector<8x128xf32> to vector<1x128xf32>
    %cst_29 = arith.constant dense<0.000000e+00> : vector<1x128xf32>
    %71 = tpu.matmul %69, %5, %cst_29 {dimension_numbers = #tpu.dot_dimension_numbers<[1], [0], [0], [1], [0, 0, 1, 1], [], []>} : vector<1x32xf32>, vector<32x128xf32>, vector<1x128xf32> -> vector<1x128xf32>
    %72 = arith.addf %70, %71 : vector<1x128xf32>
    %73 = arith.negf %72 : vector<1x128xf32>
    %74 = math.exp %73 : vector<1x128xf32>
    %cst_30 = arith.constant 1.000000e+00 : f32
    %75 = vector.broadcast %cst_30 : f32 to vector<1x128xf32>
    %76 = arith.addf %75, %74 : vector<1x128xf32>
    %77 = arith.divf %75, %76 : vector<1x128xf32>
    %78 = math.tanh %72 : vector<1x128xf32>
    %79 = vector.extract_strided_slice %77 {offsets = [0, 0], sizes = [1, 32], strides = [1, 1]} : vector<1x128xf32> to vector<1x32xf32>
    %80 = vector.extract_strided_slice %77 {offsets = [0, 32], sizes = [1, 32], strides = [1, 1]} : vector<1x128xf32> to vector<1x32xf32>
    %81 = vector.extract_strided_slice %78 {offsets = [0, 64], sizes = [1, 32], strides = [1, 1]} : vector<1x128xf32> to vector<1x32xf32>
    %82 = vector.extract_strided_slice %77 {offsets = [0, 96], sizes = [1, 32], strides = [1, 1]} : vector<1x128xf32> to vector<1x32xf32>
    %83 = arith.mulf %80, %67 : vector<1x32xf32>
    %84 = arith.mulf %79, %81 : vector<1x32xf32>
    %85 = arith.addf %83, %84 : vector<1x32xf32>
    %86 = math.tanh %85 : vector<1x32xf32>
    %87 = arith.mulf %82, %86 : vector<1x32xf32>
    %88 = vector.extract_strided_slice %31 {offsets = [3, 0], sizes = [1, 128], strides = [1, 1]} : vector<8x128xf32> to vector<1x128xf32>
    %cst_31 = arith.constant dense<0.000000e+00> : vector<1x128xf32>
    %89 = tpu.matmul %87, %5, %cst_31 {dimension_numbers = #tpu.dot_dimension_numbers<[1], [0], [0], [1], [0, 0, 1, 1], [], []>} : vector<1x32xf32>, vector<32x128xf32>, vector<1x128xf32> -> vector<1x128xf32>
    %90 = arith.addf %88, %89 : vector<1x128xf32>
    %91 = arith.negf %90 : vector<1x128xf32>
    %92 = math.exp %91 : vector<1x128xf32>
    %cst_32 = arith.constant 1.000000e+00 : f32
    %93 = vector.broadcast %cst_32 : f32 to vector<1x128xf32>
    %94 = arith.addf %93, %92 : vector<1x128xf32>
    %95 = arith.divf %93, %94 : vector<1x128xf32>
    %96 = math.tanh %90 : vector<1x128xf32>
    %97 = vector.extract_strided_slice %95 {offsets = [0, 0], sizes = [1, 32], strides = [1, 1]} : vector<1x128xf32> to vector<1x32xf32>
    %98 = vector.extract_strided_slice %95 {offsets = [0, 32], sizes = [1, 32], strides = [1, 1]} : vector<1x128xf32> to vector<1x32xf32>
    %99 = vector.extract_strided_slice %96 {offsets = [0, 64], sizes = [1, 32], strides = [1, 1]} : vector<1x128xf32> to vector<1x32xf32>
    %100 = vector.extract_strided_slice %95 {offsets = [0, 96], sizes = [1, 32], strides = [1, 1]} : vector<1x128xf32> to vector<1x32xf32>
    %101 = arith.mulf %98, %85 : vector<1x32xf32>
    %102 = arith.mulf %97, %99 : vector<1x32xf32>
    %103 = arith.addf %101, %102 : vector<1x32xf32>
    %104 = math.tanh %103 : vector<1x32xf32>
    %105 = arith.mulf %100, %104 : vector<1x32xf32>
    %106 = vector.extract_strided_slice %31 {offsets = [4, 0], sizes = [1, 128], strides = [1, 1]} : vector<8x128xf32> to vector<1x128xf32>
    %cst_33 = arith.constant dense<0.000000e+00> : vector<1x128xf32>
    %107 = tpu.matmul %105, %5, %cst_33 {dimension_numbers = #tpu.dot_dimension_numbers<[1], [0], [0], [1], [0, 0, 1, 1], [], []>} : vector<1x32xf32>, vector<32x128xf32>, vector<1x128xf32> -> vector<1x128xf32>
    %108 = arith.addf %106, %107 : vector<1x128xf32>
    %109 = arith.negf %108 : vector<1x128xf32>
    %110 = math.exp %109 : vector<1x128xf32>
    %cst_34 = arith.constant 1.000000e+00 : f32
    %111 = vector.broadcast %cst_34 : f32 to vector<1x128xf32>
    %112 = arith.addf %111, %110 : vector<1x128xf32>
    %113 = arith.divf %111, %112 : vector<1x128xf32>
    %114 = math.tanh %108 : vector<1x128xf32>
    %115 = vector.extract_strided_slice %113 {offsets = [0, 0], sizes = [1, 32], strides = [1, 1]} : vector<1x128xf32> to vector<1x32xf32>
    %116 = vector.extract_strided_slice %113 {offsets = [0, 32], sizes = [1, 32], strides = [1, 1]} : vector<1x128xf32> to vector<1x32xf32>
    %117 = vector.extract_strided_slice %114 {offsets = [0, 64], sizes = [1, 32], strides = [1, 1]} : vector<1x128xf32> to vector<1x32xf32>
    %118 = vector.extract_strided_slice %113 {offsets = [0, 96], sizes = [1, 32], strides = [1, 1]} : vector<1x128xf32> to vector<1x32xf32>
    %119 = arith.mulf %116, %103 : vector<1x32xf32>
    %120 = arith.mulf %115, %117 : vector<1x32xf32>
    %121 = arith.addf %119, %120 : vector<1x32xf32>
    %122 = math.tanh %121 : vector<1x32xf32>
    %123 = arith.mulf %118, %122 : vector<1x32xf32>
    %124 = vector.extract_strided_slice %31 {offsets = [5, 0], sizes = [1, 128], strides = [1, 1]} : vector<8x128xf32> to vector<1x128xf32>
    %cst_35 = arith.constant dense<0.000000e+00> : vector<1x128xf32>
    %125 = tpu.matmul %123, %5, %cst_35 {dimension_numbers = #tpu.dot_dimension_numbers<[1], [0], [0], [1], [0, 0, 1, 1], [], []>} : vector<1x32xf32>, vector<32x128xf32>, vector<1x128xf32> -> vector<1x128xf32>
    %126 = arith.addf %124, %125 : vector<1x128xf32>
    %127 = arith.negf %126 : vector<1x128xf32>
    %128 = math.exp %127 : vector<1x128xf32>
    %cst_36 = arith.constant 1.000000e+00 : f32
    %129 = vector.broadcast %cst_36 : f32 to vector<1x128xf32>
    %130 = arith.addf %129, %128 : vector<1x128xf32>
    %131 = arith.divf %129, %130 : vector<1x128xf32>
    %132 = math.tanh %126 : vector<1x128xf32>
    %133 = vector.extract_strided_slice %131 {offsets = [0, 0], sizes = [1, 32], strides = [1, 1]} : vector<1x128xf32> to vector<1x32xf32>
    %134 = vector.extract_strided_slice %131 {offsets = [0, 32], sizes = [1, 32], strides = [1, 1]} : vector<1x128xf32> to vector<1x32xf32>
    %135 = vector.extract_strided_slice %132 {offsets = [0, 64], sizes = [1, 32], strides = [1, 1]} : vector<1x128xf32> to vector<1x32xf32>
    %136 = vector.extract_strided_slice %131 {offsets = [0, 96], sizes = [1, 32], strides = [1, 1]} : vector<1x128xf32> to vector<1x32xf32>
    %137 = arith.mulf %134, %121 : vector<1x32xf32>
    %138 = arith.mulf %133, %135 : vector<1x32xf32>
    %139 = arith.addf %137, %138 : vector<1x32xf32>
    %140 = math.tanh %139 : vector<1x32xf32>
    %141 = arith.mulf %136, %140 : vector<1x32xf32>
    %142 = vector.extract_strided_slice %31 {offsets = [6, 0], sizes = [1, 128], strides = [1, 1]} : vector<8x128xf32> to vector<1x128xf32>
    %cst_37 = arith.constant dense<0.000000e+00> : vector<1x128xf32>
    %143 = tpu.matmul %141, %5, %cst_37 {dimension_numbers = #tpu.dot_dimension_numbers<[1], [0], [0], [1], [0, 0, 1, 1], [], []>} : vector<1x32xf32>, vector<32x128xf32>, vector<1x128xf32> -> vector<1x128xf32>
    %144 = arith.addf %142, %143 : vector<1x128xf32>
    %145 = arith.negf %144 : vector<1x128xf32>
    %146 = math.exp %145 : vector<1x128xf32>
    %cst_38 = arith.constant 1.000000e+00 : f32
    %147 = vector.broadcast %cst_38 : f32 to vector<1x128xf32>
    %148 = arith.addf %147, %146 : vector<1x128xf32>
    %149 = arith.divf %147, %148 : vector<1x128xf32>
    %150 = math.tanh %144 : vector<1x128xf32>
    %151 = vector.extract_strided_slice %149 {offsets = [0, 0], sizes = [1, 32], strides = [1, 1]} : vector<1x128xf32> to vector<1x32xf32>
    %152 = vector.extract_strided_slice %149 {offsets = [0, 32], sizes = [1, 32], strides = [1, 1]} : vector<1x128xf32> to vector<1x32xf32>
    %153 = vector.extract_strided_slice %150 {offsets = [0, 64], sizes = [1, 32], strides = [1, 1]} : vector<1x128xf32> to vector<1x32xf32>
    %154 = vector.extract_strided_slice %149 {offsets = [0, 96], sizes = [1, 32], strides = [1, 1]} : vector<1x128xf32> to vector<1x32xf32>
    %155 = arith.mulf %152, %139 : vector<1x32xf32>
    %156 = arith.mulf %151, %153 : vector<1x32xf32>
    %157 = arith.addf %155, %156 : vector<1x32xf32>
    %158 = math.tanh %157 : vector<1x32xf32>
    %159 = arith.mulf %154, %158 : vector<1x32xf32>
    %160 = vector.extract_strided_slice %31 {offsets = [7, 0], sizes = [1, 128], strides = [1, 1]} : vector<8x128xf32> to vector<1x128xf32>
    %cst_39 = arith.constant dense<0.000000e+00> : vector<1x128xf32>
    %161 = tpu.matmul %159, %5, %cst_39 {dimension_numbers = #tpu.dot_dimension_numbers<[1], [0], [0], [1], [0, 0, 1, 1], [], []>} : vector<1x32xf32>, vector<32x128xf32>, vector<1x128xf32> -> vector<1x128xf32>
    %162 = arith.addf %160, %161 : vector<1x128xf32>
    %163 = arith.negf %162 : vector<1x128xf32>
    %164 = math.exp %163 : vector<1x128xf32>
    %cst_40 = arith.constant 1.000000e+00 : f32
    %165 = vector.broadcast %cst_40 : f32 to vector<1x128xf32>
    %166 = arith.addf %165, %164 : vector<1x128xf32>
    %167 = arith.divf %165, %166 : vector<1x128xf32>
    %168 = math.tanh %162 : vector<1x128xf32>
    %169 = vector.extract_strided_slice %167 {offsets = [0, 0], sizes = [1, 32], strides = [1, 1]} : vector<1x128xf32> to vector<1x32xf32>
    %170 = vector.extract_strided_slice %167 {offsets = [0, 32], sizes = [1, 32], strides = [1, 1]} : vector<1x128xf32> to vector<1x32xf32>
    %171 = vector.extract_strided_slice %168 {offsets = [0, 64], sizes = [1, 32], strides = [1, 1]} : vector<1x128xf32> to vector<1x32xf32>
    %172 = vector.extract_strided_slice %167 {offsets = [0, 96], sizes = [1, 32], strides = [1, 1]} : vector<1x128xf32> to vector<1x32xf32>
    %173 = arith.mulf %170, %157 : vector<1x32xf32>
    %174 = arith.mulf %169, %171 : vector<1x32xf32>
    %175 = arith.addf %173, %174 : vector<1x32xf32>
    %176 = math.tanh %175 : vector<1x32xf32>
    %177 = arith.mulf %172, %176 : vector<1x32xf32>
    %cst_41 = arith.constant dense<0.000000e+00> : vector<1x128xf32>
    %178 = tpu.matmul %177, %7, %cst_41 {dimension_numbers = #tpu.dot_dimension_numbers<[1], [0], [0], [1], [0, 0, 1, 1], [], []>} : vector<1x32xf32>, vector<32x128xf32>, vector<1x128xf32> -> vector<1x128xf32>
    %179 = arith.addf %178, %33 : vector<1x128xf32>
    %cst_42 = arith.constant dense<0.000000e+00> : vector<1x128xf32>
    %180 = tpu.matmul %16, %9, %cst_42 {dimension_numbers = #tpu.dot_dimension_numbers<[1], [0], [0], [1], [0, 0, 1, 1], [], []>} : vector<1x32xf32>, vector<32x128xf32>, vector<1x128xf32> -> vector<1x128xf32>
    %181 = arith.addf %179, %180 : vector<1x128xf32>
    %182 = arith.negf %181 : vector<1x128xf32>
    %183 = math.exp %182 : vector<1x128xf32>
    %cst_43 = arith.constant 1.000000e+00 : f32
    %184 = vector.broadcast %cst_43 : f32 to vector<1x128xf32>
    %185 = arith.addf %184, %183 : vector<1x128xf32>
    %186 = arith.divf %184, %185 : vector<1x128xf32>
    %187 = math.tanh %181 : vector<1x128xf32>
    %188 = vector.extract_strided_slice %186 {offsets = [0, 0], sizes = [1, 32], strides = [1, 1]} : vector<1x128xf32> to vector<1x32xf32>
    %189 = vector.extract_strided_slice %186 {offsets = [0, 32], sizes = [1, 32], strides = [1, 1]} : vector<1x128xf32> to vector<1x32xf32>
    %190 = vector.extract_strided_slice %187 {offsets = [0, 64], sizes = [1, 32], strides = [1, 1]} : vector<1x128xf32> to vector<1x32xf32>
    %191 = vector.extract_strided_slice %186 {offsets = [0, 96], sizes = [1, 32], strides = [1, 1]} : vector<1x128xf32> to vector<1x32xf32>
    %192 = arith.mulf %189, %17 : vector<1x32xf32>
    %193 = arith.mulf %188, %190 : vector<1x32xf32>
    %194 = arith.addf %192, %193 : vector<1x32xf32>
    %195 = math.tanh %194 : vector<1x32xf32>
    %196 = arith.mulf %191, %195 : vector<1x32xf32>
    %cst_44 = arith.constant dense<0.000000e+00> : vector<1x5xf32>
    %197 = tpu.matmul %196, %11, %cst_44 {dimension_numbers = #tpu.dot_dimension_numbers<[1], [0], [0], [1], [0, 0, 1, 1], [], []>} : vector<1x32xf32>, vector<32x5xf32>, vector<1x5xf32> -> vector<1x5xf32>
    %198 = arith.addf %197, %12 : vector<1x5xf32>
    %cst_45 = arith.constant 0.000000e+00 : f32
    %199 = vector.broadcast %cst_45 : f32 to vector<1x96xf32>
    %200 = tpu.concatenate %177, %199 in 1 : vector<1x32xf32>, vector<1x96xf32> -> vector<1x128xf32>
    %cst_46 = arith.constant 0.000000e+00 : f32
    %201 = vector.broadcast %cst_46 : f32 to vector<1x96xf32>
    %202 = tpu.concatenate %175, %201 in 1 : vector<1x32xf32>, vector<1x96xf32> -> vector<1x128xf32>
    %cst_47 = arith.constant 0.000000e+00 : f32
    %203 = vector.broadcast %cst_47 : f32 to vector<1x96xf32>
    %204 = tpu.concatenate %196, %203 in 1 : vector<1x32xf32>, vector<1x96xf32> -> vector<1x128xf32>
    %cst_48 = arith.constant 0.000000e+00 : f32
    %205 = vector.broadcast %cst_48 : f32 to vector<1x96xf32>
    %206 = tpu.concatenate %194, %205 in 1 : vector<1x32xf32>, vector<1x96xf32> -> vector<1x128xf32>
    %cst_49 = arith.constant 0.000000e+00 : f32
    %207 = vector.broadcast %cst_49 : f32 to vector<1x123xf32>
    %208 = tpu.concatenate %198, %207 in 1 : vector<1x5xf32>, vector<1x123xf32> -> vector<1x128xf32>
    %cst_50 = arith.constant 0.000000e+00 : f32
    %209 = vector.broadcast %cst_50 : f32 to vector<3x128xf32>
    %210 = tpu.concatenate %200, %202, %204, %206, %208, %209 in 0 : vector<1x128xf32>, vector<1x128xf32>, vector<1x128xf32>, vector<1x128xf32>, vector<1x128xf32>, vector<3x128xf32> -> vector<8x128xf32>
    %c0_51 = arith.constant 0 : index
    %c0_52 = arith.constant 0 : index
    %211 = vector.load %arg2[%c0_51, %c0_52] : memref<8x128xf32, #tpu.memory_space<vmem>>, vector<8x128xf32>
    tpu.vector_store %arg2[%c0_51, %c0_52], %210 {strides = array<i32>} : memref<8x128xf32, #tpu.memory_space<vmem>>, vector<8x128xf32>,
    return
  }
}

</mosaic_0001>

<llo_original>
// kernel: tpu_custom_call.1
$region0: #{tpu_custom_call.1}
  #allocation0 [shape = 'u32[]', space=smem, size = 0x4, offset = 0x4, fixed_abs, tag = 'smem constant byte address 0x4 - core index']
  #allocation1 [shape = 'u32[144,128]{1,0:T(1,128)}', space=vmem, size = 0x12000, scoped, tag = 'internal scratch']
  %s0 = inlined_call_operand.hbm [shape: f32[16,128], index: 0, kind: input, shape index: {}]
  %s1 = inlined_call_operand.hbm [shape: f32[384,128], index: 1, kind: input, shape index: {}]
  %s2 = inlined_call_operand.hbm [shape: f32[8,128], index: 2, kind: output, shape index: {}]
  %s3 = sld [smem:[#allocation0]]
  $region26: #{tpu_custom_call.1} parent=0
    _
  %s5 = ssub.s32 1, %s3
  %s6 = scalar_select 0, %s5, %s3
  $region1: #{tpu_custom_call.1} parent=0
    #allocation2 [shape = 'u8[8192]{0}', space=vmem, size = 0x2000, scoped, tag = 'input window, operand 0, single buffered']
    #allocation3 [shape = 's32[1]{0}', space=sflag, size = 0x4, scoped, tag = 'scoped memory for tpu_custom_call.1']
    #allocation4 [shape = 's32[1]{0}', space=sflag, size = 0x4, scoped, tag = 'scoped memory for tpu_custom_call.1']
    #allocation5 [shape = 'u8[196608]{0}', space=vmem, size = 0x30000, scoped, tag = 'input window, operand 1, single buffered']
    #allocation6 [shape = 's32[1]{0}', space=sflag, size = 0x4, scoped, tag = 'scoped memory for tpu_custom_call.1']
    #allocation7 [shape = 'u8[4096]{0}', space=vmem, size = 0x1000, scoped, tag = 'output window, operand 0, single buffered']
    %7 = vsyncpa [#allocation3], 0
    %8 = vsyncpa [#allocation6], 0
    %9 = vsyncpa [#allocation4], 0
    // Predicated region
    $region2: #{tpu_custom_call.1} parent=1 // pred_check
      _
    $region3: #{tpu_custom_call.1} parent=1 // pred_check_branch
      %11 = sbr.rel (0) target = $region5
    $region4: #{tpu_custom_call.1} parent=1 // pred_region
      %s13 = ssub.s32 256, 256
      %14 = vsyncadd [#allocation3], %s13
      %s15 = sshll.u32 [#allocation2], 4
      %s16 = int_to_ptr.vmem [resolvable:$true] %s15
      %21 = dma.hbm_to_vmem [thread:$0]  %s0, 256, %s16, [#allocation3], 128, 128, 8
    $region5: #{tpu_custom_call.1} parent=1 // pred_fallthru
      _
    // Predicated region
    $region6: #{tpu_custom_call.1} parent=1 // pred_check
      _
    $region7: #{tpu_custom_call.1} parent=1 // pred_check_branch
      %23 = sbr.rel (0) target = $region9
    $region8: #{tpu_custom_call.1} parent=1 // pred_region
      %s25 = ssub.s32 6144, 6144
      %26 = vsyncadd [#allocation6], %s25
      %s27 = sshll.u32 [#allocation5], 4
      %s28 = int_to_ptr.vmem [resolvable:$true] %s27
      %33 = dma.hbm_to_vmem [thread:$0]  %s1, 6144, %s28, [#allocation6], 128, 128, 8
    $region9: #{tpu_custom_call.1} parent=1 // pred_fallthru
      _
    // Predicated region
    $region10: #{tpu_custom_call.1} parent=1 // pred_check
      _
    $region11: #{tpu_custom_call.1} parent=1 // pred_check_branch
      %35 = sbr.rel (0) target = $region13
    $region12: #{tpu_custom_call.1} parent=1 // pred_region
      %36 = dma.done [#allocation3], 256
    $region13: #{tpu_custom_call.1} parent=1 // pred_fallthru
      _
    // Predicated region
    $region14: #{tpu_custom_call.1} parent=1 // pred_check
      _
    $region15: #{tpu_custom_call.1} parent=1 // pred_check_branch
      %38 = sbr.rel (0) target = $region17
    $region16: #{tpu_custom_call.1} parent=1 // pred_region
      %39 = dma.done [#allocation6], 6144
    $region17: #{tpu_custom_call.1} parent=1 // pred_fallthru
      _
    %v40 = vld [vmem:[#allocation5] sm:$0xff]
    %v41 = vld [vmem:[#allocation5 + $0x8] sm:$0x1]
    %v42 = vld [vmem:[#allocation5 + $0x10] sm:$0x1]
    %v43 = vld [vmem:[#allocation5 + $0x18] sm:$0xff]
    %v44 = vld [vmem:[#allocation5 + $0x20] sm:$0xff]
    %v45 = vld [vmem:[#allocation5 + $0x28] sm:$0xff]
    %v46 = vld [vmem:[#allocation5 + $0x30] sm:$0xff]
    %v47 = vld [vmem:[#allocation5 + $0x38] sm:$0xff]
    %v48 = vld [vmem:[#allocation5 + $0x40] sm:$0xff]
    %v49 = vld [vmem:[#allocation5 + $0x48] sm:$0xff]
    %v50 = vld [vmem:[#allocation5 + $0x50] sm:$0xff]
    %v51 = vld [vmem:[#allocation5 + $0x58] sm:$0x1]
    %v52 = vld [vmem:[#allocation5 + $0x60] sm:$0xff]
    %v53 = vld [vmem:[#allocation5 + $0x68] sm:$0xff]
    %v54 = vld [vmem:[#allocation5 + $0x70] sm:$0xff]
    %v55 = vld [vmem:[#allocation5 + $0x78] sm:$0xff]
    %v56 = vld [vmem:[#allocation5 + $0x80] sm:$0xff]
    %v57 = vld [vmem:[#allocation5 + $0x88] sm:$0xff]
    %v58 = vld [vmem:[#allocation5 + $0x90] sm:$0xff]
    %v59 = vld [vmem:[#allocation5 + $0x98] sm:$0xff]
    %v60 = vld [vmem:[#allocation5 + $0xa0] sm:$0xff]
    %v61 = vld [vmem:[#allocation5 + $0xa8] sm:$0xff]
    %v62 = vld [vmem:[#allocation5 + $0xb0] sm:$0xff]
    %v63 = vld [vmem:[#allocation5 + $0xb8] sm:$0xff]
    %v64 = vld [vmem:[#allocation5 + $0xc0] sm:$0xff]
    %v65 = vld [vmem:[#allocation5 + $0xc8] sm:$0xff]
    %v66 = vld [vmem:[#allocation5 + $0xd0] sm:$0xff]
    %v67 = vld [vmem:[#allocation5 + $0xd8] sm:$0xff]
    %v68 = vld [vmem:[#allocation5 + $0xe0] sm:$0xff]
    %v69 = vld [vmem:[#allocation5 + $0xe8] sm:$0xff]
    %v70 = vld [vmem:[#allocation5 + $0xf0] sm:$0xff]
    %v71 = vld [vmem:[#allocation5 + $0xf8] sm:$0xff]
    %v72 = vld [vmem:[#allocation5 + $0x100] sm:$0x1]
    %v73 = vld [vmem:[#allocation5 + $0x108] sm:$0xff]
    %v74 = vld [vmem:[#allocation5 + $0x110] sm:$0xff]
    %v75 = vld [vmem:[#allocation5 + $0x118] sm:$0xff]
    %v76 = vld [vmem:[#allocation5 + $0x120] sm:$0xff]
    %v77 = vld [vmem:[#allocation5 + $0x128] sm:$0x1f]
    %v78 = vld [vmem:[#allocation5 + $0x130] sm:$0xff]
    %v79 = vld [vmem:[#allocation5 + $0x138] sm:$0xff]
    %v80 = vld [vmem:[#allocation5 + $0x140] sm:$0xff]
    %v81 = vld [vmem:[#allocation5 + $0x148] sm:$0xff]
    %v82 = vld [vmem:[#allocation5 + $0x150] sm:$0x1]
    %v83 = vld [vmem:[#allocation5 + $0x158] sm:$0xff]
    %v84 = vld [vmem:[#allocation5 + $0x160] sm:$0xff]
    %v85 = vld [vmem:[#allocation5 + $0x168] sm:$0xff]
    %v86 = vld [vmem:[#allocation5 + $0x170] sm:$0xff]
    %v87 = vld [vmem:[#allocation5 + $0x178] sm:$0x1]
    %v88 = vld [vmem:[#allocation2] sm:$0xff]
    %v89 = vld [vmem:[#allocation2 + $0x8] sm:$0x1]
    %v90 = vld [vmem:[#allocation2 + $0x9] sm:$0x1]
    %v91 = vld [vmem:[#allocation2 + $0xa] sm:$0x1]
    %v92 = vld [vmem:[#allocation2 + $0xb] sm:$0x1]
    %v93 = vld [vmem:[#allocation2 + $0xc] sm:$0x1]
    %v94 = vlaneseq
    %v95 = vshrl.u32 %v94, 7
    %v96 = vsub.s32 0, %v95
    %v97 = vrot.slane %v42, %v96
    %vm98 = vcmask 72704
    %v100 = vsel %vm98, %v88, 0
    %vm102 = vcmask 1040384
    %v104 = vsel %vm102, %v41, 0
    %106 = vmatprep.subr.mxu0 0.0
    %107 = vmatpush1.msra.mxu0 %v40
    %108 = vmatprep.subr.mxu0 0.0
    %109 = vmatpush1.msra.mxu0 %v104
    %110 = vmatprep.subr.mxu0 0.0
    %111 = vmatpush1.msra.mxu0 0.0
    %112 = vmatprep.subr.mxu0 0.0
    %113 = vmatpush1.msra.mxu0 0.0
    %114 = vmatprep.subr.mxu0 0.0
    %115 = vmatpush1.msra.mxu0 0.0
    %116 = vmatprep.subr.mxu0 0.0
    %117 = vmatpush1.msra.mxu0 0.0
    %118 = vmatprep.subr.mxu0 0.0
    %119 = vmatpush1.msra.mxu0 0.0
    %120 = vmatprep.subr.mxu0 0.0
    %121 = vmatpush1.msra.mxu0 0.0
    %122 = vmatprep.subr.mxu0 0.0
    %123 = vmatpush1.msra.mxu0 0.0
    %124 = vmatprep.subr.mxu0 0.0
    %125 = vmatpush1.msra.mxu0 0.0
    %126 = vmatprep.subr.mxu0 0.0
    %127 = vmatpush1.msra.mxu0 0.0
    %128 = vmatprep.subr.mxu0 0.0
    %129 = vmatpush1.msra.mxu0 0.0
    %130 = vmatprep.subr.mxu0 0.0
    %131 = vmatpush1.msra.mxu0 0.0
    %132 = vmatprep.subr.mxu0 0.0
    %133 = vmatpush1.msra.mxu0 0.0
    %134 = vmatprep.subr.mxu0 0.0
    %135 = vmatpush1.msra.mxu0 0.0
    %136 = vmatprep.subr.mxu0 0.0
    %137 = vmatpush1.msra.mxu0 0.0
    %138 = vmatprep.subr.mxu0 0.0
    %139 = vmatpush1.msra.mxu0 0.0
    %140 = vmatprep.subr.mxu0 0.0
    %141 = vmatpush1.msra.mxu0 0.0
    %142 = vmatprep.subr.mxu0 0.0
    %143 = vmatpush1.msra.mxu0 0.0
    %144 = vmatprep.subr.mxu0 0.0
    %145 = vmatpush1.msra.mxu0 0.0
    %146 = vmatprep.subr.mxu0 0.0
    %147 = vmatpush1.msra.mxu0 0.0
    %148 = vmatprep.subr.mxu0 0.0
    %149 = vmatpush1.msra.mxu0 0.0
    %150 = vmatprep.subr.mxu0 0.0
    %151 = vmatpush1.msra.mxu0 0.0
    %152 = vmatprep.subr.mxu0 0.0
    %153 = vmatpush1.msra.mxu0 0.0
    %154 = vmatprep.subr.mxu0 0.0
    %155 = vmatpush1.msra.mxu0 0.0
    %156 = vmatprep.subr.mxu0 0.0
    %157 = vmatpush1.msra.mxu0 0.0
    %158 = vmatprep.subr.mxu0 0.0
    %159 = vmatpush1.msra.mxu0 0.0
    %160 = vmatprep.subr.mxu0 0.0
    %161 = vmatpush1.msra.mxu0 0.0
    %162 = vmatprep.subr.mxu0 0.0
    %163 = vmatpush1.msra.mxu0 0.0
    %164 = vmatprep.subr.mxu0 0.0
    %165 = vmatpush1.msra.mxu0 0.0
    %166 = vmatprep.subr.mxu0 0.0
    %167 = vmatpush1.msra.mxu0 0.0
    %168 = vmatprep.subr.mxu0 0.0
    %169 = vmatpush1.msra.mxu0 0.0
    %170 = vmatprep.mubr.f32.mxu0 0.0
    %171 = vmatmul.mubr.f32.gmra.mrb[0].mxu0 %v100
    %v172 = vpop.f32.mrb[0].mxu0
    %v173 = vadd.f32 %v97, %v172
    %v174 = vpop.f32.mrb[0].mxu0
    %175 = vdwg.mxu0
    %v176 = vmax.f32 %v173, 0.0
    %v177 = vlaneseq
    %v178 = vshrl.u32 %v177, 7
    %v179 = vsub.s32 0, %v178
    %v180 = vrot.slane %v51, %v179
    %vm181 = vcmask 523264
    %v183 = vsel %vm181, %v176, 0
    %185 = vmatprep.subr.mxu0 0.0
    %186 = vmatpush1.msra.mxu0 %v43
    %187 = vmatprep.subr.mxu0 0.0
    %188 = vmatpush1.msra.mxu0 %v44
    %189 = vmatprep.subr.mxu0 0.0
    %190 = vmatpush1.msra.mxu0 %v45
    %191 = vmatprep.subr.mxu0 0.0
    %192 = vmatpush1.msra.mxu0 %v46
    %193 = vmatprep.subr.mxu0 0.0
    %194 = vmatpush1.msra.mxu0 %v47
    %195 = vmatprep.subr.mxu0 0.0
    %196 = vmatpush1.msra.mxu0 %v48
    %197 = vmatprep.subr.mxu0 0.0
    %198 = vmatpush1.msra.mxu0 %v49
    %199 = vmatprep.subr.mxu0 0.0
    %200 = vmatpush1.msra.mxu0 %v50
    %201 = vmatprep.subr.mxu0 0.0
    %202 = vmatpush1.msra.mxu0 0.0
    %203 = vmatprep.subr.mxu0 0.0
    %204 = vmatpush1.msra.mxu0 0.0
    %205 = vmatprep.subr.mxu0 0.0
    %206 = vmatpush1.msra.mxu0 0.0
    %207 = vmatprep.subr.mxu0 0.0
    %208 = vmatpush1.msra.mxu0 0.0
    %209 = vmatprep.subr.mxu0 0.0
    %210 = vmatpush1.msra.mxu0 0.0
    %211 = vmatprep.subr.mxu0 0.0
    %212 = vmatpush1.msra.mxu0 0.0
    %213 = vmatprep.subr.mxu0 0.0
    %214 = vmatpush1.msra.mxu0 0.0
    %215 = vmatprep.subr.mxu0 0.0
    %216 = vmatpush1.msra.mxu0 0.0
    %217 = vmatprep.subr.mxu0 0.0
    %218 = vmatpush1.msra.mxu0 0.0
    %219 = vmatprep.subr.mxu0 0.0
    %220 = vmatpush1.msra.mxu0 0.0
    %221 = vmatprep.subr.mxu0 0.0
    %222 = vmatpush1.msra.mxu0 0.0
    %223 = vmatprep.subr.mxu0 0.0
    %224 = vmatpush1.msra.mxu0 0.0
    %225 = vmatprep.subr.mxu0 0.0
    %226 = vmatpush1.msra.mxu0 0.0
    %227 = vmatprep.subr.mxu0 0.0
    %228 = vmatpush1.msra.mxu0 0.0
    %229 = vmatprep.subr.mxu0 0.0
    %230 = vmatpush1.msra.mxu0 0.0
    %231 = vmatprep.subr.mxu0 0.0
    %232 = vmatpush1.msra.mxu0 0.0
    %233 = vmatprep.subr.mxu0 0.0
    %234 = vmatpush1.msra.mxu0 0.0
    %235 = vmatprep.subr.mxu0 0.0
    %236 = vmatpush1.msra.mxu0 0.0
    %237 = vmatprep.subr.mxu0 0.0
    %238 = vmatpush1.msra.mxu0 0.0
    %239 = vmatprep.subr.mxu0 0.0
    %240 = vmatpush1.msra.mxu0 0.0
    %241 = vmatprep.subr.mxu0 0.0
    %242 = vmatpush1.msra.mxu0 0.0
    %243 = vmatprep.subr.mxu0 0.0
    %244 = vmatpush1.msra.mxu0 0.0
    %245 = vmatprep.subr.mxu0 0.0
    %246 = vmatpush1.msra.mxu0 0.0
    %247 = vmatprep.subr.mxu0 0.0
    %248 = vmatpush1.msra.mxu0 0.0
    %249 = vmatprep.mubr.f32.mxu0 0.0
    %250 = vmatmul.mubr.f32.gmra.mrb[0].mxu0 %v183
    %v251 = vpop.f32.mrb[0].mxu0
    %v252 = vadd.f32 %v180, %v251
    %v253 = vpop.f32.mrb[0].mxu0
    %254 = vdwg.mxu0
    %v255 = vmax.f32 %v252, 0.0
    %v256 = vlaneseq
    %v257 = vshrl.u32 %v256, 7
    %v258 = vsub.s32 0, %v257
    %v259 = vrot.slane %v72, %v258
    %260 = vmatprep.subr.mxu0 0.0
    %261 = vmatpush1.msra.mxu0 %v52
    %262 = vmatprep.subr.mxu0 0.0
    %263 = vmatpush1.msra.mxu0 %v53
    %264 = vmatprep.subr.mxu0 0.0
    %265 = vmatpush1.msra.mxu0 %v54
    %266 = vmatprep.subr.mxu0 0.0
    %267 = vmatpush1.msra.mxu0 %v55
    %268 = vmatprep.subr.mxu0 0.0
    %269 = vmatpush1.msra.mxu0 %v56
    %270 = vmatprep.subr.mxu0 0.0
    %271 = vmatpush1.msra.mxu0 %v57
    %272 = vmatprep.subr.mxu0 0.0
    %273 = vmatpush1.msra.mxu0 %v58
    %274 = vmatprep.subr.mxu0 0.0
    %275 = vmatpush1.msra.mxu0 %v59
    %276 = vmatprep.subr.mxu0 0.0
    %277 = vmatpush1.msra.mxu0 %v60
    %278 = vmatprep.subr.mxu0 0.0
    %279 = vmatpush1.msra.mxu0 %v61
    %280 = vmatprep.subr.mxu0 0.0
    %281 = vmatpush1.msra.mxu0 %v62
    %282 = vmatprep.subr.mxu0 0.0
    %283 = vmatpush1.msra.mxu0 %v63
    %284 = vmatprep.subr.mxu0 0.0
    %285 = vmatpush1.msra.mxu0 %v64
    %286 = vmatprep.subr.mxu0 0.0
    %287 = vmatpush1.msra.mxu0 %v65
    %288 = vmatprep.subr.mxu0 0.0
    %289 = vmatpush1.msra.mxu0 %v66
    %290 = vmatprep.subr.mxu0 0.0
    %291 = vmatpush1.msra.mxu0 %v67
    %292 = vmatprep.subr.mxu0 0.0
    %293 = vmatpush1.msra.mxu0 0.0
    %294 = vmatprep.subr.mxu0 0.0
    %295 = vmatpush1.msra.mxu0 0.0
    %296 = vmatprep.subr.mxu0 0.0
    %297 = vmatpush1.msra.mxu0 0.0
    %298 = vmatprep.subr.mxu0 0.0
    %299 = vmatpush1.msra.mxu0 0.0
    %300 = vmatprep.subr.mxu0 0.0
    %301 = vmatpush1.msra.mxu0 0.0
    %302 = vmatprep.subr.mxu0 0.0
    %303 = vmatpush1.msra.mxu0 0.0
    %304 = vmatprep.subr.mxu0 0.0
    %305 = vmatpush1.msra.mxu0 0.0
    %306 = vmatprep.subr.mxu0 0.0
    %307 = vmatpush1.msra.mxu0 0.0
    %308 = vmatprep.subr.mxu0 0.0
    %309 = vmatpush1.msra.mxu0 0.0
    %310 = vmatprep.subr.mxu0 0.0
    %311 = vmatpush1.msra.mxu0 0.0
    %312 = vmatprep.subr.mxu0 0.0
    %313 = vmatpush1.msra.mxu0 0.0
    %314 = vmatprep.subr.mxu0 0.0
    %315 = vmatpush1.msra.mxu0 0.0
    %316 = vmatprep.subr.mxu0 0.0
    %317 = vmatpush1.msra.mxu0 0.0
    %318 = vmatprep.subr.mxu0 0.0
    %319 = vmatpush1.msra.mxu0 0.0
    %320 = vmatprep.subr.mxu0 0.0
    %321 = vmatpush1.msra.mxu0 0.0
    %322 = vmatprep.subr.mxu0 0.0
    %323 = vmatpush1.msra.mxu0 0.0
    %324 = vmatprep.mubr.f32.mxu0 0.0
    %325 = vmatmul.mubr.f32.gmra.mrb[0].mxu0 %v255
    %v326 = vpop.f32.mrb[0].mxu0
    %v327 = vadd.f32 %v259, %v326
    %v328 = vpop.f32.mrb[0].mxu0
    %329 = vdwg.mxu0
    %vm330 = vcmask 39936
    %v332 = vsel %vm330, %v93, 0
    %vm334 = vcmask 1044480
    %v336 = vsel %vm334, %v77, 0
    %338 = vmatprep.subr.mxu0 0.0
    %339 = vmatpush1.msra.mxu0 %v336
    %340 = vmatprep.subr.mxu0 0.0
    %341 = vmatpush1.msra.mxu0 0.0
    %342 = vmatprep.subr.mxu0 0.0
    %343 = vmatpush1.msra.mxu0 0.0
    %344 = vmatprep.subr.mxu0 0.0
    %345 = vmatpush1.msra.mxu0 0.0
    %346 = vmatprep.subr.mxu0 0.0
    %347 = vmatpush1.msra.mxu0 0.0
    %348 = vmatprep.subr.mxu0 0.0
    %349 = vmatpush1.msra.mxu0 0.0
    %350 = vmatprep.subr.mxu0 0.0
    %351 = vmatpush1.msra.mxu0 0.0
    %352 = vmatprep.subr.mxu0 0.0
    %353 = vmatpush1.msra.mxu0 0.0
    %354 = vmatprep.subr.mxu0 0.0
    %355 = vmatpush1.msra.mxu0 0.0
    %356 = vmatprep.subr.mxu0 0.0
    %357 = vmatpush1.msra.mxu0 0.0
    %358 = vmatprep.subr.mxu0 0.0
    %359 = vmatpush1.msra.mxu0 0.0
    %360 = vmatprep.subr.mxu0 0.0
    %361 = vmatpush1.msra.mxu0 0.0
    %362 = vmatprep.subr.mxu0 0.0
    %363 = vmatpush1.msra.mxu0 0.0
    %364 = vmatprep.subr.mxu0 0.0
    %365 = vmatpush1.msra.mxu0 0.0
    %366 = vmatprep.subr.mxu0 0.0
    %367 = vmatpush1.msra.mxu0 0.0
    %368 = vmatprep.subr.mxu0 0.0
    %369 = vmatpush1.msra.mxu0 0.0
    %370 = vmatprep.subr.mxu0 0.0
    %371 = vmatpush1.msra.mxu0 0.0
    %372 = vmatprep.subr.mxu0 0.0
    %373 = vmatpush1.msra.mxu0 0.0
    %374 = vmatprep.subr.mxu0 0.0
    %375 = vmatpush1.msra.mxu0 0.0
    %376 = vmatprep.subr.mxu0 0.0
    %377 = vmatpush1.msra.mxu0 0.0
    %378 = vmatprep.subr.mxu0 0.0
    %379 = vmatpush1.msra.mxu0 0.0
    %380 = vmatprep.subr.mxu0 0.0
    %381 = vmatpush1.msra.mxu0 0.0
    %382 = vmatprep.subr.mxu0 0.0
    %383 = vmatpush1.msra.mxu0 0.0
    %384 = vmatprep.subr.mxu0 0.0
    %385 = vmatpush1.msra.mxu0 0.0
    %386 = vmatprep.subr.mxu0 0.0
    %387 = vmatpush1.msra.mxu0 0.0
    %388 = vmatprep.subr.mxu0 0.0
    %389 = vmatpush1.msra.mxu0 0.0
    %390 = vmatprep.subr.mxu0 0.0
    %391 = vmatpush1.msra.mxu0 0.0
    %392 = vmatprep.subr.mxu0 0.0
    %393 = vmatpush1.msra.mxu0 0.0
    %394 = vmatprep.subr.mxu0 0.0
    %395 = vmatpush1.msra.mxu0 0.0
    %396 = vmatprep.subr.mxu0 0.0
    %397 = vmatpush1.msra.mxu0 0.0
    %398 = vmatprep.subr.mxu0 0.0
    %399 = vmatpush1.msra.mxu0 0.0
    %400 = vmatprep.subr.mxu0 0.0
    %401 = vmatpush1.msra.mxu0 0.0
    %402 = vmatprep.mubr.f32.mxu0 0.0
    %403 = vmatmul.mubr.f32.gmra.mrb[0].mxu0 %v332
    %v404 = vpop.f32.mrb[0].mxu0
    %v405 = vadd.f32 %v82, %v404
    %v406 = vpop.f32.mrb[0].mxu0
    %407 = vdwg.mxu0
    %vm408 = vcmask 261120
    %v410 = vsel %vm408, %v89, 0
    %412 = vmatprep.subr.mxu0 0.0
    %413 = vmatpush1.msra.mxu0 %v68
    %414 = vmatprep.subr.mxu0 0.0
    %415 = vmatpush1.msra.mxu0 %v69
    %416 = vmatprep.subr.mxu0 0.0
    %417 = vmatpush1.msra.mxu0 %v70
    %418 = vmatprep.subr.mxu0 0.0
    %419 = vmatpush1.msra.mxu0 %v71
    %420 = vmatprep.subr.mxu0 0.0
    %421 = vmatpush1.msra.mxu0 0.0
    %422 = vmatprep.subr.mxu0 0.0
    %423 = vmatpush1.msra.mxu0 0.0
    %424 = vmatprep.subr.mxu0 0.0
    %425 = vmatpush1.msra.mxu0 0.0
    %426 = vmatprep.subr.mxu0 0.0
    %427 = vmatpush1.msra.mxu0 0.0
    %428 = vmatprep.subr.mxu0 0.0
    %429 = vmatpush1.msra.mxu0 0.0
    %430 = vmatprep.subr.mxu0 0.0
    %431 = vmatpush1.msra.mxu0 0.0
    %432 = vmatprep.subr.mxu0 0.0
    %433 = vmatpush1.msra.mxu0 0.0
    %434 = vmatprep.subr.mxu0 0.0
    %435 = vmatpush1.msra.mxu0 0.0
    %436 = vmatprep.subr.mxu0 0.0
    %437 = vmatpush1.msra.mxu0 0.0
    %438 = vmatprep.subr.mxu0 0.0
    %439 = vmatpush1.msra.mxu0 0.0
    %440 = vmatprep.subr.mxu0 0.0
    %441 = vmatpush1.msra.mxu0 0.0
    %442 = vmatprep.subr.mxu0 0.0
    %443 = vmatpush1.msra.mxu0 0.0
    %444 = vmatprep.subr.mxu0 0.0
    %445 = vmatpush1.msra.mxu0 0.0
    %446 = vmatprep.subr.mxu0 0.0
    %447 = vmatpush1.msra.mxu0 0.0
    %448 = vmatprep.subr.mxu0 0.0
    %449 = vmatpush1.msra.mxu0 0.0
    %450 = vmatprep.subr.mxu0 0.0
    %451 = vmatpush1.msra.mxu0 0.0
    %452 = vmatprep.subr.mxu0 0.0
    %453 = vmatpush1.msra.mxu0 0.0
    %454 = vmatprep.subr.mxu0 0.0
    %455 = vmatpush1.msra.mxu0 0.0
    %456 = vmatprep.subr.mxu0 0.0
    %457 = vmatpush1.msra.mxu0 0.0
    %458 = vmatprep.subr.mxu0 0.0
    %459 = vmatpush1.msra.mxu0 0.0
    %460 = vmatprep.subr.mxu0 0.0
    %461 = vmatpush1.msra.mxu0 0.0
    %462 = vmatprep.subr.mxu0 0.0
    %463 = vmatpush1.msra.mxu0 0.0
    %464 = vmatprep.subr.mxu0 0.0
    %465 = vmatpush1.msra.mxu0 0.0
    %466 = vmatprep.subr.mxu0 0.0
    %467 = vmatpush1.msra.mxu0 0.0
    %468 = vmatprep.subr.mxu0 0.0
    %469 = vmatpush1.msra.mxu0 0.0
    %470 = vmatprep.subr.mxu0 0.0
    %471 = vmatpush1.msra.mxu0 0.0
    %472 = vmatprep.subr.mxu0 0.0
    %473 = vmatpush1.msra.mxu0 0.0
    %474 = vmatprep.subr.mxu0 0.0
    %475 = vmatpush1.msra.mxu0 0.0
    %476 = vmatprep.mubr.f32.mxu0 0.0
    %477 = vmatmul.mubr.f32.gmra.mrb[0].mxu0 %v410
    %v478 = vpop.f32.mrb[0].mxu0
    %v479 = vadd.f32 0.0, %v478
    %v480 = vpop.f32.mrb[0].mxu0
    %481 = vdwg.mxu0
    %v482 = vadd.f32 %v327, %v479
    %v483 = vxor.u32 %v482, 2147483648
    %v484 = vmul.f32 %v483, 1.442695
    %v485 = vpow.pop %v484
    %v486 = vadd.f32 %v485, 1.0
    %v487 = vrcp.pop %v486
    %v488 = vmul.f32 1.0, %v487
    %v489 = vtanh.pop %v482
    %491 = vrot.lane.b32.xlu0 %v90, 32
    %v492 = vpop.permute.xlu0 %491
    %v494 = vmul.f32 %v488, %v492
    %496 = vrot.lane.b32.xlu0 %v489, 64
    %v497 = vpop.permute.xlu0 %496
    %v499 = vmul.f32 %v488, %v497
    %501 = vrot.lane.b32.xlu0 %v499, 32
    %v502 = vpop.permute.xlu0 %501
    %v504 = vadd.f32 %v494, %v502
    %v505 = vtanh.pop %v504
    %507 = vrot.lane.b32.xlu0 %v505, 64
    %v508 = vpop.permute.xlu0 %507
    %v510 = vmul.f32 %v488, %v508
    %512 = vrot.lane.b32.xlu0 %v510, 32
    %v513 = vpop.permute.xlu0 %512
    %v514 = vsel %vm408, %v513, 0
    %516 = vmatprep.subr.mxu0 0.0
    %517 = vmatpush1.msra.mxu0 %v68
    %518 = vmatprep.subr.mxu0 0.0
    %519 = vmatpush1.msra.mxu0 %v69
    %520 = vmatprep.subr.mxu0 0.0
    %521 = vmatpush1.msra.mxu0 %v70
    %522 = vmatprep.subr.mxu0 0.0
    %523 = vmatpush1.msra.mxu0 %v71
    %524 = vmatprep.subr.mxu0 0.0
    %525 = vmatpush1.msra.mxu0 0.0
    %526 = vmatprep.subr.mxu0 0.0
    %527 = vmatpush1.msra.mxu0 0.0
    %528 = vmatprep.subr.mxu0 0.0
    %529 = vmatpush1.msra.mxu0 0.0
    %530 = vmatprep.subr.mxu0 0.0
    %531 = vmatpush1.msra.mxu0 0.0
    %532 = vmatprep.subr.mxu0 0.0
    %533 = vmatpush1.msra.mxu0 0.0
    %534 = vmatprep.subr.mxu0 0.0
    %535 = vmatpush1.msra.mxu0 0.0
    %536 = vmatprep.subr.mxu0 0.0
    %537 = vmatpush1.msra.mxu0 0.0
    %538 = vmatprep.subr.mxu0 0.0
    %539 = vmatpush1.msra.mxu0 0.0
    %540 = vmatprep.subr.mxu0 0.0
    %541 = vmatpush1.msra.mxu0 0.0
    %542 = vmatprep.subr.mxu0 0.0
    %543 = vmatpush1.msra.mxu0 0.0
    %544 = vmatprep.subr.mxu0 0.0
    %545 = vmatpush1.msra.mxu0 0.0
    %546 = vmatprep.subr.mxu0 0.0
    %547 = vmatpush1.msra.mxu0 0.0
    %548 = vmatprep.subr.mxu0 0.0
    %549 = vmatpush1.msra.mxu0 0.0
    %550 = vmatprep.subr.mxu0 0.0
    %551 = vmatpush1.msra.mxu0 0.0
    %552 = vmatprep.subr.mxu0 0.0
    %553 = vmatpush1.msra.mxu0 0.0
    %554 = vmatprep.subr.mxu0 0.0
    %555 = vmatpush1.msra.mxu0 0.0
    %556 = vmatprep.subr.mxu0 0.0
    %557 = vmatpush1.msra.mxu0 0.0
    %558 = vmatprep.subr.mxu0 0.0
    %559 = vmatpush1.msra.mxu0 0.0
    %560 = vmatprep.subr.mxu0 0.0
    %561 = vmatpush1.msra.mxu0 0.0
    %562 = vmatprep.subr.mxu0 0.0
    %563 = vmatpush1.msra.mxu0 0.0
    %564 = vmatprep.subr.mxu0 0.0
    %565 = vmatpush1.msra.mxu0 0.0
    %566 = vmatprep.subr.mxu0 0.0
    %567 = vmatpush1.msra.mxu0 0.0
    %568 = vmatprep.subr.mxu0 0.0
    %569 = vmatpush1.msra.mxu0 0.0
    %570 = vmatprep.subr.mxu0 0.0
    %571 = vmatpush1.msra.mxu0 0.0
    %572 = vmatprep.subr.mxu0 0.0
    %573 = vmatpush1.msra.mxu0 0.0
    %574 = vmatprep.subr.mxu0 0.0
    %575 = vmatpush1.msra.mxu0 0.0
    %576 = vmatprep.subr.mxu0 0.0
    %577 = vmatpush1.msra.mxu0 0.0
    %578 = vmatprep.subr.mxu0 0.0
    %579 = vmatpush1.msra.mxu0 0.0
    %580 = vmatprep.mubr.f32.mxu0 0.0
    %581 = vmatmul.mubr.f32.gmra.mrb[0].mxu0 %v514
    %v582 = vpop.f32.mrb[0].mxu0
    %v583 = vadd.f32 0.0, %v582
    %v584 = vpop.f32.mrb[0].mxu0
    %585 = vdwg.mxu0
    %v587 = vrot.slane %v583, 7
    %v589 = vadd.f32 %v327, %v587
    %v590 = vxor.u32 %v589, 2147483648
    %v591 = vmul.f32 %v590, 1.442695
    %v592 = vpow.pop %v591
    %v593 = vadd.f32 %v592, 1.0
    %v594 = vrcp.pop %v593
    %v595 = vmul.f32 1.0, %v594
    %v596 = vtanh.pop %v589
    %v598 = vrot.slane %v504, 7
    %v600 = vmul.f32 %v595, %v598
    %602 = vrot.lane.b32.xlu0 %v596, 64
    %v603 = vpop.permute.xlu0 %602
    %v605 = vmul.f32 %v595, %v603
    %607 = vrot.lane.b32.xlu0 %v605, 32
    %v608 = vpop.permute.xlu0 %607
    %v610 = vadd.f32 %v600, %v608
    %v611 = vtanh.pop %v610
    %613 = vrot.lane.b32.xlu0 %v611, 64
    %v614 = vpop.permute.xlu0 %613
    %v616 = vmul.f32 %v595, %v614
    %v618 = vrot.slane %v616, 1
    %619 = vrot.lane.b32.xlu0 %v618, 32
    %v620 = vpop.permute.xlu0 %619
    %v621 = vsel %vm408, %v620, 0
    %623 = vmatprep.subr.mxu0 0.0
    %624 = vmatpush1.msra.mxu0 %v68
    %625 = vmatprep.subr.mxu0 0.0
    %626 = vmatpush1.msra.mxu0 %v69
    %627 = vmatprep.subr.mxu0 0.0
    %628 = vmatpush1.msra.mxu0 %v70
    %629 = vmatprep.subr.mxu0 0.0
    %630 = vmatpush1.msra.mxu0 %v71
    %631 = vmatprep.subr.mxu0 0.0
    %632 = vmatpush1.msra.mxu0 0.0
    %633 = vmatprep.subr.mxu0 0.0
    %634 = vmatpush1.msra.mxu0 0.0
    %635 = vmatprep.subr.mxu0 0.0
    %636 = vmatpush1.msra.mxu0 0.0
    %637 = vmatprep.subr.mxu0 0.0
    %638 = vmatpush1.msra.mxu0 0.0
    %639 = vmatprep.subr.mxu0 0.0
    %640 = vmatpush1.msra.mxu0 0.0
    %641 = vmatprep.subr.mxu0 0.0
    %642 = vmatpush1.msra.mxu0 0.0
    %643 = vmatprep.subr.mxu0 0.0
    %644 = vmatpush1.msra.mxu0 0.0
    %645 = vmatprep.subr.mxu0 0.0
    %646 = vmatpush1.msra.mxu0 0.0
    %647 = vmatprep.subr.mxu0 0.0
    %648 = vmatpush1.msra.mxu0 0.0
    %649 = vmatprep.subr.mxu0 0.0
    %650 = vmatpush1.msra.mxu0 0.0
    %651 = vmatprep.subr.mxu0 0.0
    %652 = vmatpush1.msra.mxu0 0.0
    %653 = vmatprep.subr.mxu0 0.0
    %654 = vmatpush1.msra.mxu0 0.0
    %655 = vmatprep.subr.mxu0 0.0
    %656 = vmatpush1.msra.mxu0 0.0
    %657 = vmatprep.subr.mxu0 0.0
    %658 = vmatpush1.msra.mxu0 0.0
    %659 = vmatprep.subr.mxu0 0.0
    %660 = vmatpush1.msra.mxu0 0.0
    %661 = vmatprep.subr.mxu0 0.0
    %662 = vmatpush1.msra.mxu0 0.0
    %663 = vmatprep.subr.mxu0 0.0
    %664 = vmatpush1.msra.mxu0 0.0
    %665 = vmatprep.subr.mxu0 0.0
    %666 = vmatpush1.msra.mxu0 0.0
    %667 = vmatprep.subr.mxu0 0.0
    %668 = vmatpush1.msra.mxu0 0.0
    %669 = vmatprep.subr.mxu0 0.0
    %670 = vmatpush1.msra.mxu0 0.0
    %671 = vmatprep.subr.mxu0 0.0
    %672 = vmatpush1.msra.mxu0 0.0
    %673 = vmatprep.subr.mxu0 0.0
    %674 = vmatpush1.msra.mxu0 0.0
    %675 = vmatprep.subr.mxu0 0.0
    %676 = vmatpush1.msra.mxu0 0.0
    %677 = vmatprep.subr.mxu0 0.0
    %678 = vmatpush1.msra.mxu0 0.0
    %679 = vmatprep.subr.mxu0 0.0
    %680 = vmatpush1.msra.mxu0 0.0
    %681 = vmatprep.subr.mxu0 0.0
    %682 = vmatpush1.msra.mxu0 0.0
    %683 = vmatprep.subr.mxu0 0.0
    %684 = vmatpush1.msra.mxu0 0.0
    %685 = vmatprep.subr.mxu0 0.0
    %686 = vmatpush1.msra.mxu0 0.0
    %687 = vmatprep.mubr.f32.mxu0 0.0
    %688 = vmatmul.mubr.f32.gmra.mrb[0].mxu0 %v621
    %v689 = vpop.f32.mrb[0].mxu0
    %v690 = vadd.f32 0.0, %v689
    %v691 = vpop.f32.mrb[0].mxu0
    %692 = vdwg.mxu0
    %v694 = vrot.slane %v690, 6
    %v696 = vadd.f32 %v327, %v694
    %v697 = vxor.u32 %v696, 2147483648
    %v698 = vmul.f32 %v697, 1.442695
    %v699 = vpow.pop %v698
    %v700 = vadd.f32 %v699, 1.0
    %v701 = vrcp.pop %v700
    %v702 = vmul.f32 1.0, %v701
    %v703 = vtanh.pop %v696
    %v705 = vrot.slane %v610, 7
    %v707 = vmul.f32 %v702, %v705
    %709 = vrot.lane.b32.xlu0 %v703, 64
    %v710 = vpop.permute.xlu0 %709
    %v712 = vmul.f32 %v702, %v710
    %714 = vrot.lane.b32.xlu0 %v712, 32
    %v715 = vpop.permute.xlu0 %714
    %v717 = vadd.f32 %v707, %v715
    %v718 = vtanh.pop %v717
    %720 = vrot.lane.b32.xlu0 %v718, 64
    %v721 = vpop.permute.xlu0 %720
    %v723 = vmul.f32 %v702, %v721
    %v725 = vrot.slane %v723, 2
    %726 = vrot.lane.b32.xlu0 %v725, 32
    %v727 = vpop.permute.xlu0 %726
    %v728 = vsel %vm408, %v727, 0
    %730 = vmatprep.subr.mxu0 0.0
    %731 = vmatpush1.msra.mxu0 %v68
    %732 = vmatprep.subr.mxu0 0.0
    %733 = vmatpush1.msra.mxu0 %v69
    %734 = vmatprep.subr.mxu0 0.0
    %735 = vmatpush1.msra.mxu0 %v70
    %736 = vmatprep.subr.mxu0 0.0
    %737 = vmatpush1.msra.mxu0 %v71
    %738 = vmatprep.subr.mxu0 0.0
    %739 = vmatpush1.msra.mxu0 0.0
    %740 = vmatprep.subr.mxu0 0.0
    %741 = vmatpush1.msra.mxu0 0.0
    %742 = vmatprep.subr.mxu0 0.0
    %743 = vmatpush1.msra.mxu0 0.0
    %744 = vmatprep.subr.mxu0 0.0
    %745 = vmatpush1.msra.mxu0 0.0
    %746 = vmatprep.subr.mxu0 0.0
    %747 = vmatpush1.msra.mxu0 0.0
    %748 = vmatprep.subr.mxu0 0.0
    %749 = vmatpush1.msra.mxu0 0.0
    %750 = vmatprep.subr.mxu0 0.0
    %751 = vmatpush1.msra.mxu0 0.0
    %752 = vmatprep.subr.mxu0 0.0
    %753 = vmatpush1.msra.mxu0 0.0
    %754 = vmatprep.subr.mxu0 0.0
    %755 = vmatpush1.msra.mxu0 0.0
    %756 = vmatprep.subr.mxu0 0.0
    %757 = vmatpush1.msra.mxu0 0.0
    %758 = vmatprep.subr.mxu0 0.0
    %759 = vmatpush1.msra.mxu0 0.0
    %760 = vmatprep.subr.mxu0 0.0
    %761 = vmatpush1.msra.mxu0 0.0
    %762 = vmatprep.subr.mxu0 0.0
    %763 = vmatpush1.msra.mxu0 0.0
    %764 = vmatprep.subr.mxu0 0.0
    %765 = vmatpush1.msra.mxu0 0.0
    %766 = vmatprep.subr.mxu0 0.0
    %767 = vmatpush1.msra.mxu0 0.0
    %768 = vmatprep.subr.mxu0 0.0
    %769 = vmatpush1.msra.mxu0 0.0
    %770 = vmatprep.subr.mxu0 0.0
    %771 = vmatpush1.msra.mxu0 0.0
    %772 = vmatprep.subr.mxu0 0.0
    %773 = vmatpush1.msra.mxu0 0.0
    %774 = vmatprep.subr.mxu0 0.0
    %775 = vmatpush1.msra.mxu0 0.0
    %776 = vmatprep.subr.mxu0 0.0
    %777 = vmatpush1.msra.mxu0 0.0
    %778 = vmatprep.subr.mxu0 0.0
    %779 = vmatpush1.msra.mxu0 0.0
    %780 = vmatprep.subr.mxu0 0.0
    %781 = vmatpush1.msra.mxu0 0.0
    %782 = vmatprep.subr.mxu0 0.0
    %783 = vmatpush1.msra.mxu0 0.0
    %784 = vmatprep.subr.mxu0 0.0
    %785 = vmatpush1.msra.mxu0 0.0
    %786 = vmatprep.subr.mxu0 0.0
    %787 = vmatpush1.msra.mxu0 0.0
    %788 = vmatprep.subr.mxu0 0.0
    %789 = vmatpush1.msra.mxu0 0.0
    %790 = vmatprep.subr.mxu0 0.0
    %791 = vmatpush1.msra.mxu0 0.0
    %792 = vmatprep.subr.mxu0 0.0
    %793 = vmatpush1.msra.mxu0 0.0
    %794 = vmatprep.mubr.f32.mxu0 0.0
    %795 = vmatmul.mubr.f32.gmra.mrb[0].mxu0 %v728
    %v796 = vpop.f32.mrb[0].mxu0
    %v797 = vadd.f32 0.0, %v796
    %v798 = vpop.f32.mrb[0].mxu0
    %799 = vdwg.mxu0
    %v801 = vrot.slane %v797, 5
    %v803 = vadd.f32 %v327, %v801
    %v804 = vxor.u32 %v803, 2147483648
    %v805 = vmul.f32 %v804, 1.442695
    %v806 = vpow.pop %v805
    %v807 = vadd.f32 %v806, 1.0
    %v808 = vrcp.pop %v807
    %v809 = vmul.f32 1.0, %v808
    %v810 = vtanh.pop %v803
    %v812 = vrot.slane %v717, 7
    %v814 = vmul.f32 %v809, %v812
    %816 = vrot.lane.b32.xlu0 %v810, 64
    %v817 = vpop.permute.xlu0 %816
    %v819 = vmul.f32 %v809, %v817
    %821 = vrot.lane.b32.xlu0 %v819, 32
    %v822 = vpop.permute.xlu0 %821
    %v824 = vadd.f32 %v814, %v822
    %v825 = vtanh.pop %v824
    %827 = vrot.lane.b32.xlu0 %v825, 64
    %v828 = vpop.permute.xlu0 %827
    %v830 = vmul.f32 %v809, %v828
    %v832 = vrot.slane %v830, 3
    %833 = vrot.lane.b32.xlu0 %v832, 32
    %v834 = vpop.permute.xlu0 %833
    %v835 = vsel %vm408, %v834, 0
    %837 = vmatprep.subr.mxu0 0.0
    %838 = vmatpush1.msra.mxu0 %v68
    %839 = vmatprep.subr.mxu0 0.0
    %840 = vmatpush1.msra.mxu0 %v69
    %841 = vmatprep.subr.mxu0 0.0
    %842 = vmatpush1.msra.mxu0 %v70
    %843 = vmatprep.subr.mxu0 0.0
    %844 = vmatpush1.msra.mxu0 %v71
    %845 = vmatprep.subr.mxu0 0.0
    %846 = vmatpush1.msra.mxu0 0.0
    %847 = vmatprep.subr.mxu0 0.0
    %848 = vmatpush1.msra.mxu0 0.0
    %849 = vmatprep.subr.mxu0 0.0
    %850 = vmatpush1.msra.mxu0 0.0
    %851 = vmatprep.subr.mxu0 0.0
    %852 = vmatpush1.msra.mxu0 0.0
    %853 = vmatprep.subr.mxu0 0.0
    %854 = vmatpush1.msra.mxu0 0.0
    %855 = vmatprep.subr.mxu0 0.0
    %856 = vmatpush1.msra.mxu0 0.0
    %857 = vmatprep.subr.mxu0 0.0
    %858 = vmatpush1.msra.mxu0 0.0
    %859 = vmatprep.subr.mxu0 0.0
    %860 = vmatpush1.msra.mxu0 0.0
    %861 = vmatprep.subr.mxu0 0.0
    %862 = vmatpush1.msra.mxu0 0.0
    %863 = vmatprep.subr.mxu0 0.0
    %864 = vmatpush1.msra.mxu0 0.0
    %865 = vmatprep.subr.mxu0 0.0
    %866 = vmatpush1.msra.mxu0 0.0
    %867 = vmatprep.subr.mxu0 0.0
    %868 = vmatpush1.msra.mxu0 0.0
    %869 = vmatprep.subr.mxu0 0.0
    %870 = vmatpush1.msra.mxu0 0.0
    %871 = vmatprep.subr.mxu0 0.0
    %872 = vmatpush1.msra.mxu0 0.0
    %873 = vmatprep.subr.mxu0 0.0
    %874 = vmatpush1.msra.mxu0 0.0
    %875 = vmatprep.subr.mxu0 0.0
    %876 = vmatpush1.msra.mxu0 0.0
    %877 = vmatprep.subr.mxu0 0.0
    %878 = vmatpush1.msra.mxu0 0.0
    %879 = vmatprep.subr.mxu0 0.0
    %880 = vmatpush1.msra.mxu0 0.0
    %881 = vmatprep.subr.mxu0 0.0
    %882 = vmatpush1.msra.mxu0 0.0
    %883 = vmatprep.subr.mxu0 0.0
    %884 = vmatpush1.msra.mxu0 0.0
    %885 = vmatprep.subr.mxu0 0.0
    %886 = vmatpush1.msra.mxu0 0.0
    %887 = vmatprep.subr.mxu0 0.0
    %888 = vmatpush1.msra.mxu0 0.0
    %889 = vmatprep.subr.mxu0 0.0
    %890 = vmatpush1.msra.mxu0 0.0
    %891 = vmatprep.subr.mxu0 0.0
    %892 = vmatpush1.msra.mxu0 0.0
    %893 = vmatprep.subr.mxu0 0.0
    %894 = vmatpush1.msra.mxu0 0.0
    %895 = vmatprep.subr.mxu0 0.0
    %896 = vmatpush1.msra.mxu0 0.0
    %897 = vmatprep.subr.mxu0 0.0
    %898 = vmatpush1.msra.mxu0 0.0
    %899 = vmatprep.subr.mxu0 0.0
    %900 = vmatpush1.msra.mxu0 0.0
    %901 = vmatprep.mubr.f32.mxu0 0.0
    %902 = vmatmul.mubr.f32.gmra.mrb[0].mxu0 %v835
    %v903 = vpop.f32.mrb[0].mxu0
    %v904 = vadd.f32 0.0, %v903
    %v905 = vpop.f32.mrb[0].mxu0
    %906 = vdwg.mxu0
    %v908 = vrot.slane %v904, 4
    %v910 = vadd.f32 %v327, %v908
    %v911 = vxor.u32 %v910, 2147483648
    %v912 = vmul.f32 %v911, 1.442695
    %v913 = vpow.pop %v912
    %v914 = vadd.f32 %v913, 1.0
    %v915 = vrcp.pop %v914
    %v916 = vmul.f32 1.0, %v915
    %v917 = vtanh.pop %v910
    %v919 = vrot.slane %v824, 7
    %v921 = vmul.f32 %v916, %v919
    %923 = vrot.lane.b32.xlu0 %v917, 64
    %v924 = vpop.permute.xlu0 %923
    %v926 = vmul.f32 %v916, %v924
    %928 = vrot.lane.b32.xlu0 %v926, 32
    %v929 = vpop.permute.xlu0 %928
    %v931 = vadd.f32 %v921, %v929
    %v932 = vtanh.pop %v931
    %934 = vrot.lane.b32.xlu0 %v932, 64
    %v935 = vpop.permute.xlu0 %934
    %v937 = vmul.f32 %v916, %v935
    %v939 = vrot.slane %v937, 4
    %940 = vrot.lane.b32.xlu0 %v939, 32
    %v941 = vpop.permute.xlu0 %940
    %v942 = vsel %vm408, %v941, 0
    %944 = vmatprep.subr.mxu0 0.0
    %945 = vmatpush1.msra.mxu0 %v68
    %946 = vmatprep.subr.mxu0 0.0
    %947 = vmatpush1.msra.mxu0 %v69
    %948 = vmatprep.subr.mxu0 0.0
    %949 = vmatpush1.msra.mxu0 %v70
    %950 = vmatprep.subr.mxu0 0.0
    %951 = vmatpush1.msra.mxu0 %v71
    %952 = vmatprep.subr.mxu0 0.0
    %953 = vmatpush1.msra.mxu0 0.0
    %954 = vmatprep.subr.mxu0 0.0
    %955 = vmatpush1.msra.mxu0 0.0
    %956 = vmatprep.subr.mxu0 0.0
    %957 = vmatpush1.msra.mxu0 0.0
    %958 = vmatprep.subr.mxu0 0.0
    %959 = vmatpush1.msra.mxu0 0.0
    %960 = vmatprep.subr.mxu0 0.0
    %961 = vmatpush1.msra.mxu0 0.0
    %962 = vmatprep.subr.mxu0 0.0
    %963 = vmatpush1.msra.mxu0 0.0
    %964 = vmatprep.subr.mxu0 0.0
    %965 = vmatpush1.msra.mxu0 0.0
    %966 = vmatprep.subr.mxu0 0.0
    %967 = vmatpush1.msra.mxu0 0.0
    %968 = vmatprep.subr.mxu0 0.0
    %969 = vmatpush1.msra.mxu0 0.0
    %970 = vmatprep.subr.mxu0 0.0
    %971 = vmatpush1.msra.mxu0 0.0
    %972 = vmatprep.subr.mxu0 0.0
    %973 = vmatpush1.msra.mxu0 0.0
    %974 = vmatprep.subr.mxu0 0.0
    %975 = vmatpush1.msra.mxu0 0.0
    %976 = vmatprep.subr.mxu0 0.0
    %977 = vmatpush1.msra.mxu0 0.0
    %978 = vmatprep.subr.mxu0 0.0
    %979 = vmatpush1.msra.mxu0 0.0
    %980 = vmatprep.subr.mxu0 0.0
    %981 = vmatpush1.msra.mxu0 0.0
    %982 = vmatprep.subr.mxu0 0.0
    %983 = vmatpush1.msra.mxu0 0.0
    %984 = vmatprep.subr.mxu0 0.0
    %985 = vmatpush1.msra.mxu0 0.0
    %986 = vmatprep.subr.mxu0 0.0
    %987 = vmatpush1.msra.mxu0 0.0
    %988 = vmatprep.subr.mxu0 0.0
    %989 = vmatpush1.msra.mxu0 0.0
    %990 = vmatprep.subr.mxu0 0.0
    %991 = vmatpush1.msra.mxu0 0.0
    %992 = vmatprep.subr.mxu0 0.0
    %993 = vmatpush1.msra.mxu0 0.0
    %994 = vmatprep.subr.mxu0 0.0
    %995 = vmatpush1.msra.mxu0 0.0
    %996 = vmatprep.subr.mxu0 0.0
    %997 = vmatpush1.msra.mxu0 0.0
    %998 = vmatprep.subr.mxu0 0.0
    %999 = vmatpush1.msra.mxu0 0.0
    %1000 = vmatprep.subr.mxu0 0.0
    %1001 = vmatpush1.msra.mxu0 0.0
    %1002 = vmatprep.subr.mxu0 0.0
    %1003 = vmatpush1.msra.mxu0 0.0
    %1004 = vmatprep.subr.mxu0 0.0
    %1005 = vmatpush1.msra.mxu0 0.0
    %1006 = vmatprep.subr.mxu0 0.0
    %1007 = vmatpush1.msra.mxu0 0.0
    %1008 = vmatprep.mubr.f32.mxu0 0.0
    %1009 = vmatmul.mubr.f32.gmra.mrb[0].mxu0 %v942
    %v1010 = vpop.f32.mrb[0].mxu0
    %v1011 = vadd.f32 0.0, %v1010
    %v1012 = vpop.f32.mrb[0].mxu0
    %1013 = vdwg.mxu0
    %v1015 = vrot.slane %v1011, 3
    %v1017 = vadd.f32 %v327, %v1015
    %v1018 = vxor.u32 %v1017, 2147483648
    %v1019 = vmul.f32 %v1018, 1.442695
    %v1020 = vpow.pop %v1019
    %v1021 = vadd.f32 %v1020, 1.0
    %v1022 = vrcp.pop %v1021
    %v1023 = vmul.f32 1.0, %v1022
    %v1024 = vtanh.pop %v1017
    %v1026 = vrot.slane %v931, 7
    %v1028 = vmul.f32 %v1023, %v1026
    %1030 = vrot.lane.b32.xlu0 %v1024, 64
    %v1031 = vpop.permute.xlu0 %1030
    %v1033 = vmul.f32 %v1023, %v1031
    %1035 = vrot.lane.b32.xlu0 %v1033, 32
    %v1036 = vpop.permute.xlu0 %1035
    %v1038 = vadd.f32 %v1028, %v1036
    %v1039 = vtanh.pop %v1038
    %1041 = vrot.lane.b32.xlu0 %v1039, 64
    %v1042 = vpop.permute.xlu0 %1041
    %v1044 = vmul.f32 %v1023, %v1042
    %v1046 = vrot.slane %v1044, 5
    %1047 = vrot.lane.b32.xlu0 %v1046, 32
    %v1048 = vpop.permute.xlu0 %1047
    %v1049 = vsel %vm408, %v1048, 0
    %1051 = vmatprep.subr.mxu0 0.0
    %1052 = vmatpush1.msra.mxu0 %v68
    %1053 = vmatprep.subr.mxu0 0.0
    %1054 = vmatpush1.msra.mxu0 %v69
    %1055 = vmatprep.subr.mxu0 0.0
    %1056 = vmatpush1.msra.mxu0 %v70
    %1057 = vmatprep.subr.mxu0 0.0
    %1058 = vmatpush1.msra.mxu0 %v71
    %1059 = vmatprep.subr.mxu0 0.0
    %1060 = vmatpush1.msra.mxu0 0.0
    %1061 = vmatprep.subr.mxu0 0.0
    %1062 = vmatpush1.msra.mxu0 0.0
    %1063 = vmatprep.subr.mxu0 0.0
    %1064 = vmatpush1.msra.mxu0 0.0
    %1065 = vmatprep.subr.mxu0 0.0
    %1066 = vmatpush1.msra.mxu0 0.0
    %1067 = vmatprep.subr.mxu0 0.0
    %1068 = vmatpush1.msra.mxu0 0.0
    %1069 = vmatprep.subr.mxu0 0.0
    %1070 = vmatpush1.msra.mxu0 0.0
    %1071 = vmatprep.subr.mxu0 0.0
    %1072 = vmatpush1.msra.mxu0 0.0
    %1073 = vmatprep.subr.mxu0 0.0
    %1074 = vmatpush1.msra.mxu0 0.0
    %1075 = vmatprep.subr.mxu0 0.0
    %1076 = vmatpush1.msra.mxu0 0.0
    %1077 = vmatprep.subr.mxu0 0.0
    %1078 = vmatpush1.msra.mxu0 0.0
    %1079 = vmatprep.subr.mxu0 0.0
    %1080 = vmatpush1.msra.mxu0 0.0
    %1081 = vmatprep.subr.mxu0 0.0
    %1082 = vmatpush1.msra.mxu0 0.0
    %1083 = vmatprep.subr.mxu0 0.0
    %1084 = vmatpush1.msra.mxu0 0.0
    %1085 = vmatprep.subr.mxu0 0.0
    %1086 = vmatpush1.msra.mxu0 0.0
    %1087 = vmatprep.subr.mxu0 0.0
    %1088 = vmatpush1.msra.mxu0 0.0
    %1089 = vmatprep.subr.mxu0 0.0
    %1090 = vmatpush1.msra.mxu0 0.0
    %1091 = vmatprep.subr.mxu0 0.0
    %1092 = vmatpush1.msra.mxu0 0.0
    %1093 = vmatprep.subr.mxu0 0.0
    %1094 = vmatpush1.msra.mxu0 0.0
    %1095 = vmatprep.subr.mxu0 0.0
    %1096 = vmatpush1.msra.mxu0 0.0
    %1097 = vmatprep.subr.mxu0 0.0
    %1098 = vmatpush1.msra.mxu0 0.0
    %1099 = vmatprep.subr.mxu0 0.0
    %1100 = vmatpush1.msra.mxu0 0.0
    %1101 = vmatprep.subr.mxu0 0.0
    %1102 = vmatpush1.msra.mxu0 0.0
    %1103 = vmatprep.subr.mxu0 0.0
    %1104 = vmatpush1.msra.mxu0 0.0
    %1105 = vmatprep.subr.mxu0 0.0
    %1106 = vmatpush1.msra.mxu0 0.0
    %1107 = vmatprep.subr.mxu0 0.0
    %1108 = vmatpush1.msra.mxu0 0.0
    %1109 = vmatprep.subr.mxu0 0.0
    %1110 = vmatpush1.msra.mxu0 0.0
    %1111 = vmatprep.subr.mxu0 0.0
    %1112 = vmatpush1.msra.mxu0 0.0
    %1113 = vmatprep.subr.mxu0 0.0
    %1114 = vmatpush1.msra.mxu0 0.0
    %1115 = vmatprep.mubr.f32.mxu0 0.0
    %1116 = vmatmul.mubr.f32.gmra.mrb[0].mxu0 %v1049
    %v1117 = vpop.f32.mrb[0].mxu0
    %v1118 = vadd.f32 0.0, %v1117
    %v1119 = vpop.f32.mrb[0].mxu0
    %1120 = vdwg.mxu0
    %v1122 = vrot.slane %v1118, 2
    %v1124 = vadd.f32 %v327, %v1122
    %v1125 = vxor.u32 %v1124, 2147483648
    %v1126 = vmul.f32 %v1125, 1.442695
    %v1127 = vpow.pop %v1126
    %v1128 = vadd.f32 %v1127, 1.0
    %v1129 = vrcp.pop %v1128
    %v1130 = vmul.f32 1.0, %v1129
    %v1131 = vtanh.pop %v1124
    %v1133 = vrot.slane %v1038, 7
    %v1135 = vmul.f32 %v1130, %v1133
    %1137 = vrot.lane.b32.xlu0 %v1131, 64
    %v1138 = vpop.permute.xlu0 %1137
    %v1140 = vmul.f32 %v1130, %v1138
    %1142 = vrot.lane.b32.xlu0 %v1140, 32
    %v1143 = vpop.permute.xlu0 %1142
    %v1145 = vadd.f32 %v1135, %v1143
    %v1146 = vtanh.pop %v1145
    %1148 = vrot.lane.b32.xlu0 %v1146, 64
    %v1149 = vpop.permute.xlu0 %1148
    %v1151 = vmul.f32 %v1130, %v1149
    %v1153 = vrot.slane %v1151, 6
    %1154 = vrot.lane.b32.xlu0 %v1153, 32
    %v1155 = vpop.permute.xlu0 %1154
    %v1156 = vsel %vm408, %v1155, 0
    %1158 = vmatprep.subr.mxu0 0.0
    %1159 = vmatpush1.msra.mxu0 %v68
    %1160 = vmatprep.subr.mxu0 0.0
    %1161 = vmatpush1.msra.mxu0 %v69
    %1162 = vmatprep.subr.mxu0 0.0
    %1163 = vmatpush1.msra.mxu0 %v70
    %1164 = vmatprep.subr.mxu0 0.0
    %1165 = vmatpush1.msra.mxu0 %v71
    %1166 = vmatprep.subr.mxu0 0.0
    %1167 = vmatpush1.msra.mxu0 0.0
    %1168 = vmatprep.subr.mxu0 0.0
    %1169 = vmatpush1.msra.mxu0 0.0
    %1170 = vmatprep.subr.mxu0 0.0
    %1171 = vmatpush1.msra.mxu0 0.0
    %1172 = vmatprep.subr.mxu0 0.0
    %1173 = vmatpush1.msra.mxu0 0.0
    %1174 = vmatprep.subr.mxu0 0.0
    %1175 = vmatpush1.msra.mxu0 0.0
    %1176 = vmatprep.subr.mxu0 0.0
    %1177 = vmatpush1.msra.mxu0 0.0
    %1178 = vmatprep.subr.mxu0 0.0
    %1179 = vmatpush1.msra.mxu0 0.0
    %1180 = vmatprep.subr.mxu0 0.0
    %1181 = vmatpush1.msra.mxu0 0.0
    %1182 = vmatprep.subr.mxu0 0.0
    %1183 = vmatpush1.msra.mxu0 0.0
    %1184 = vmatprep.subr.mxu0 0.0
    %1185 = vmatpush1.msra.mxu0 0.0
    %1186 = vmatprep.subr.mxu0 0.0
    %1187 = vmatpush1.msra.mxu0 0.0
    %1188 = vmatprep.subr.mxu0 0.0
    %1189 = vmatpush1.msra.mxu0 0.0
    %1190 = vmatprep.subr.mxu0 0.0
    %1191 = vmatpush1.msra.mxu0 0.0
    %1192 = vmatprep.subr.mxu0 0.0
    %1193 = vmatpush1.msra.mxu0 0.0
    %1194 = vmatprep.subr.mxu0 0.0
    %1195 = vmatpush1.msra.mxu0 0.0
    %1196 = vmatprep.subr.mxu0 0.0
    %1197 = vmatpush1.msra.mxu0 0.0
    %1198 = vmatprep.subr.mxu0 0.0
    %1199 = vmatpush1.msra.mxu0 0.0
    %1200 = vmatprep.subr.mxu0 0.0
    %1201 = vmatpush1.msra.mxu0 0.0
    %1202 = vmatprep.subr.mxu0 0.0
    %1203 = vmatpush1.msra.mxu0 0.0
    %1204 = vmatprep.subr.mxu0 0.0
    %1205 = vmatpush1.msra.mxu0 0.0
    %1206 = vmatprep.subr.mxu0 0.0
    %1207 = vmatpush1.msra.mxu0 0.0
    %1208 = vmatprep.subr.mxu0 0.0
    %1209 = vmatpush1.msra.mxu0 0.0
    %1210 = vmatprep.subr.mxu0 0.0
    %1211 = vmatpush1.msra.mxu0 0.0
    %1212 = vmatprep.subr.mxu0 0.0
    %1213 = vmatpush1.msra.mxu0 0.0
    %1214 = vmatprep.subr.mxu0 0.0
    %1215 = vmatpush1.msra.mxu0 0.0
    %1216 = vmatprep.subr.mxu0 0.0
    %1217 = vmatpush1.msra.mxu0 0.0
    %1218 = vmatprep.subr.mxu0 0.0
    %1219 = vmatpush1.msra.mxu0 0.0
    %1220 = vmatprep.subr.mxu0 0.0
    %1221 = vmatpush1.msra.mxu0 0.0
    %1222 = vmatprep.mubr.f32.mxu0 0.0
    %1223 = vmatmul.mubr.f32.gmra.mrb[0].mxu0 %v1156
    %v1224 = vpop.f32.mrb[0].mxu0
    %v1225 = vadd.f32 0.0, %v1224
    %v1226 = vpop.f32.mrb[0].mxu0
    %1227 = vdwg.mxu0
    %v1229 = vrot.slane %v1225, 1
    %v1231 = vadd.f32 %v327, %v1229
    %v1232 = vxor.u32 %v1231, 2147483648
    %v1233 = vmul.f32 %v1232, 1.442695
    %v1234 = vpow.pop %v1233
    %v1235 = vadd.f32 %v1234, 1.0
    %v1236 = vrcp.pop %v1235
    %v1237 = vmul.f32 1.0, %v1236
    %v1238 = vtanh.pop %v1231
    %v1240 = vrot.slane %v1145, 7
    %v1242 = vmul.f32 %v1237, %v1240
    %1244 = vrot.lane.b32.xlu0 %v1238, 64
    %v1245 = vpop.permute.xlu0 %1244
    %v1247 = vmul.f32 %v1237, %v1245
    %1249 = vrot.lane.b32.xlu0 %v1247, 32
    %v1250 = vpop.permute.xlu0 %1249
    %v1252 = vadd.f32 %v1242, %v1250
    %v1253 = vtanh.pop %v1252
    %1255 = vrot.lane.b32.xlu0 %v1253, 64
    %v1256 = vpop.permute.xlu0 %1255
    %v1258 = vmul.f32 %v1237, %v1256
    %v1260 = vrot.slane %v1258, 7
    %1261 = vrot.lane.b32.xlu0 %v1260, 32
    %v1262 = vpop.permute.xlu0 %1261
    %v1263 = vsel %vm408, %v1262, 0
    %1265 = vmatprep.subr.mxu0 0.0
    %1266 = vmatpush1.msra.mxu0 %v73
    %1267 = vmatprep.subr.mxu0 0.0
    %1268 = vmatpush1.msra.mxu0 %v74
    %1269 = vmatprep.subr.mxu0 0.0
    %1270 = vmatpush1.msra.mxu0 %v75
    %1271 = vmatprep.subr.mxu0 0.0
    %1272 = vmatpush1.msra.mxu0 %v76
    %1273 = vmatprep.subr.mxu0 0.0
    %1274 = vmatpush1.msra.mxu0 0.0
    %1275 = vmatprep.subr.mxu0 0.0
    %1276 = vmatpush1.msra.mxu0 0.0
    %1277 = vmatprep.subr.mxu0 0.0
    %1278 = vmatpush1.msra.mxu0 0.0
    %1279 = vmatprep.subr.mxu0 0.0
    %1280 = vmatpush1.msra.mxu0 0.0
    %1281 = vmatprep.subr.mxu0 0.0
    %1282 = vmatpush1.msra.mxu0 0.0
    %1283 = vmatprep.subr.mxu0 0.0
    %1284 = vmatpush1.msra.mxu0 0.0
    %1285 = vmatprep.subr.mxu0 0.0
    %1286 = vmatpush1.msra.mxu0 0.0
    %1287 = vmatprep.subr.mxu0 0.0
    %1288 = vmatpush1.msra.mxu0 0.0
    %1289 = vmatprep.subr.mxu0 0.0
    %1290 = vmatpush1.msra.mxu0 0.0
    %1291 = vmatprep.subr.mxu0 0.0
    %1292 = vmatpush1.msra.mxu0 0.0
    %1293 = vmatprep.subr.mxu0 0.0
    %1294 = vmatpush1.msra.mxu0 0.0
    %1295 = vmatprep.subr.mxu0 0.0
    %1296 = vmatpush1.msra.mxu0 0.0
    %1297 = vmatprep.subr.mxu0 0.0
    %1298 = vmatpush1.msra.mxu0 0.0
    %1299 = vmatprep.subr.mxu0 0.0
    %1300 = vmatpush1.msra.mxu0 0.0
    %1301 = vmatprep.subr.mxu0 0.0
    %1302 = vmatpush1.msra.mxu0 0.0
    %1303 = vmatprep.subr.mxu0 0.0
    %1304 = vmatpush1.msra.mxu0 0.0
    %1305 = vmatprep.subr.mxu0 0.0
    %1306 = vmatpush1.msra.mxu0 0.0
    %1307 = vmatprep.subr.mxu0 0.0
    %1308 = vmatpush1.msra.mxu0 0.0
    %1309 = vmatprep.subr.mxu0 0.0
    %1310 = vmatpush1.msra.mxu0 0.0
    %1311 = vmatprep.subr.mxu0 0.0
    %1312 = vmatpush1.msra.mxu0 0.0
    %1313 = vmatprep.subr.mxu0 0.0
    %1314 = vmatpush1.msra.mxu0 0.0
    %1315 = vmatprep.subr.mxu0 0.0
    %1316 = vmatpush1.msra.mxu0 0.0
    %1317 = vmatprep.subr.mxu0 0.0
    %1318 = vmatpush1.msra.mxu0 0.0
    %1319 = vmatprep.subr.mxu0 0.0
    %1320 = vmatpush1.msra.mxu0 0.0
    %1321 = vmatprep.subr.mxu0 0.0
    %1322 = vmatpush1.msra.mxu0 0.0
    %1323 = vmatprep.subr.mxu0 0.0
    %1324 = vmatpush1.msra.mxu0 0.0
    %1325 = vmatprep.subr.mxu0 0.0
    %1326 = vmatpush1.msra.mxu0 0.0
    %1327 = vmatprep.subr.mxu0 0.0
    %1328 = vmatpush1.msra.mxu0 0.0
    %1329 = vmatprep.mubr.f32.mxu0 0.0
    %1330 = vmatmul.mubr.f32.gmra.mrb[0].mxu0 %v1263
    %v1331 = vpop.f32.mrb[0].mxu0
    %v1332 = vadd.f32 %v405, %v1331
    %v1333 = vpop.f32.mrb[0].mxu0
    %1334 = vdwg.mxu0
    %v1336 = vsel %vm408, %v91, 0
    %1338 = vmatprep.subr.mxu0 0.0
    %1339 = vmatpush1.msra.mxu0 %v78
    %1340 = vmatprep.subr.mxu0 0.0
    %1341 = vmatpush1.msra.mxu0 %v79
    %1342 = vmatprep.subr.mxu0 0.0
    %1343 = vmatpush1.msra.mxu0 %v80
    %1344 = vmatprep.subr.mxu0 0.0
    %1345 = vmatpush1.msra.mxu0 %v81
    %1346 = vmatprep.subr.mxu0 0.0
    %1347 = vmatpush1.msra.mxu0 0.0
    %1348 = vmatprep.subr.mxu0 0.0
    %1349 = vmatpush1.msra.mxu0 0.0
    %1350 = vmatprep.subr.mxu0 0.0
    %1351 = vmatpush1.msra.mxu0 0.0
    %1352 = vmatprep.subr.mxu0 0.0
    %1353 = vmatpush1.msra.mxu0 0.0
    %1354 = vmatprep.subr.mxu0 0.0
    %1355 = vmatpush1.msra.mxu0 0.0
    %1356 = vmatprep.subr.mxu0 0.0
    %1357 = vmatpush1.msra.mxu0 0.0
    %1358 = vmatprep.subr.mxu0 0.0
    %1359 = vmatpush1.msra.mxu0 0.0
    %1360 = vmatprep.subr.mxu0 0.0
    %1361 = vmatpush1.msra.mxu0 0.0
    %1362 = vmatprep.subr.mxu0 0.0
    %1363 = vmatpush1.msra.mxu0 0.0
    %1364 = vmatprep.subr.mxu0 0.0
    %1365 = vmatpush1.msra.mxu0 0.0
    %1366 = vmatprep.subr.mxu0 0.0
    %1367 = vmatpush1.msra.mxu0 0.0
    %1368 = vmatprep.subr.mxu0 0.0
    %1369 = vmatpush1.msra.mxu0 0.0
    %1370 = vmatprep.subr.mxu0 0.0
    %1371 = vmatpush1.msra.mxu0 0.0
    %1372 = vmatprep.subr.mxu0 0.0
    %1373 = vmatpush1.msra.mxu0 0.0
    %1374 = vmatprep.subr.mxu0 0.0
    %1375 = vmatpush1.msra.mxu0 0.0
    %1376 = vmatprep.subr.mxu0 0.0
    %1377 = vmatpush1.msra.mxu0 0.0
    %1378 = vmatprep.subr.mxu0 0.0
    %1379 = vmatpush1.msra.mxu0 0.0
    %1380 = vmatprep.subr.mxu0 0.0
    %1381 = vmatpush1.msra.mxu0 0.0
    %1382 = vmatprep.subr.mxu0 0.0
    %1383 = vmatpush1.msra.mxu0 0.0
    %1384 = vmatprep.subr.mxu0 0.0
    %1385 = vmatpush1.msra.mxu0 0.0
    %1386 = vmatprep.subr.mxu0 0.0
    %1387 = vmatpush1.msra.mxu0 0.0
    %1388 = vmatprep.subr.mxu0 0.0
    %1389 = vmatpush1.msra.mxu0 0.0
    %1390 = vmatprep.subr.mxu0 0.0
    %1391 = vmatpush1.msra.mxu0 0.0
    %1392 = vmatprep.subr.mxu0 0.0
    %1393 = vmatpush1.msra.mxu0 0.0
    %1394 = vmatprep.subr.mxu0 0.0
    %1395 = vmatpush1.msra.mxu0 0.0
    %1396 = vmatprep.subr.mxu0 0.0
    %1397 = vmatpush1.msra.mxu0 0.0
    %1398 = vmatprep.subr.mxu0 0.0
    %1399 = vmatpush1.msra.mxu0 0.0
    %1400 = vmatprep.subr.mxu0 0.0
    %1401 = vmatpush1.msra.mxu0 0.0
    %1402 = vmatprep.mubr.f32.mxu0 0.0
    %1403 = vmatmul.mubr.f32.gmra.mrb[0].mxu0 %v1336
    %v1404 = vpop.f32.mrb[0].mxu0
    %v1405 = vadd.f32 0.0, %v1404
    %v1406 = vpop.f32.mrb[0].mxu0
    %1407 = vdwg.mxu0
    %v1408 = vadd.f32 %v1332, %v1405
    %v1409 = vxor.u32 %v1408, 2147483648
    %v1410 = vmul.f32 %v1409, 1.442695
    %v1411 = vpow.pop %v1410
    %v1412 = vadd.f32 %v1411, 1.0
    %v1413 = vrcp.pop %v1412
    %v1414 = vmul.f32 1.0, %v1413
    %v1415 = vtanh.pop %v1408
    %1417 = vrot.lane.b32.xlu0 %v92, 32
    %v1418 = vpop.permute.xlu0 %1417
    %v1420 = vmul.f32 %v1414, %v1418
    %1422 = vrot.lane.b32.xlu0 %v1415, 64
    %v1423 = vpop.permute.xlu0 %1422
    %v1425 = vmul.f32 %v1414, %v1423
    %1427 = vrot.lane.b32.xlu0 %v1425, 32
    %v1428 = vpop.permute.xlu0 %1427
    %v1430 = vadd.f32 %v1420, %v1428
    %v1431 = vtanh.pop %v1430
    %1433 = vrot.lane.b32.xlu0 %v1431, 64
    %v1434 = vpop.permute.xlu0 %1433
    %v1436 = vmul.f32 %v1414, %v1434
    %1438 = vrot.lane.b32.xlu0 %v1436, 32
    %v1439 = vpop.permute.xlu0 %1438
    %v1440 = vsel %vm408, %v1439, 0
    %1442 = vmatprep.subr.mxu0 0.0
    %1443 = vmatpush1.msra.mxu0 %v83
    %1444 = vmatprep.subr.mxu0 0.0
    %1445 = vmatpush1.msra.mxu0 %v84
    %1446 = vmatprep.subr.mxu0 0.0
    %1447 = vmatpush1.msra.mxu0 %v85
    %1448 = vmatprep.subr.mxu0 0.0
    %1449 = vmatpush1.msra.mxu0 %v86
    %1450 = vmatprep.subr.mxu0 0.0
    %1451 = vmatpush1.msra.mxu0 0.0
    %1452 = vmatprep.subr.mxu0 0.0
    %1453 = vmatpush1.msra.mxu0 0.0
    %1454 = vmatprep.subr.mxu0 0.0
    %1455 = vmatpush1.msra.mxu0 0.0
    %1456 = vmatprep.subr.mxu0 0.0
    %1457 = vmatpush1.msra.mxu0 0.0
    %1458 = vmatprep.subr.mxu0 0.0
    %1459 = vmatpush1.msra.mxu0 0.0
    %1460 = vmatprep.subr.mxu0 0.0
    %1461 = vmatpush1.msra.mxu0 0.0
    %1462 = vmatprep.subr.mxu0 0.0
    %1463 = vmatpush1.msra.mxu0 0.0
    %1464 = vmatprep.subr.mxu0 0.0
    %1465 = vmatpush1.msra.mxu0 0.0
    %1466 = vmatprep.subr.mxu0 0.0
    %1467 = vmatpush1.msra.mxu0 0.0
    %1468 = vmatprep.subr.mxu0 0.0
    %1469 = vmatpush1.msra.mxu0 0.0
    %1470 = vmatprep.subr.mxu0 0.0
    %1471 = vmatpush1.msra.mxu0 0.0
    %1472 = vmatprep.subr.mxu0 0.0
    %1473 = vmatpush1.msra.mxu0 0.0
    %1474 = vmatprep.subr.mxu0 0.0
    %1475 = vmatpush1.msra.mxu0 0.0
    %1476 = vmatprep.subr.mxu0 0.0
    %1477 = vmatpush1.msra.mxu0 0.0
    %1478 = vmatprep.subr.mxu0 0.0
    %1479 = vmatpush1.msra.mxu0 0.0
    %1480 = vmatprep.subr.mxu0 0.0
    %1481 = vmatpush1.msra.mxu0 0.0
    %1482 = vmatprep.subr.mxu0 0.0
    %1483 = vmatpush1.msra.mxu0 0.0
    %1484 = vmatprep.subr.mxu0 0.0
    %1485 = vmatpush1.msra.mxu0 0.0
    %1486 = vmatprep.subr.mxu0 0.0
    %1487 = vmatpush1.msra.mxu0 0.0
    %1488 = vmatprep.subr.mxu0 0.0
    %1489 = vmatpush1.msra.mxu0 0.0
    %1490 = vmatprep.subr.mxu0 0.0
    %1491 = vmatpush1.msra.mxu0 0.0
    %1492 = vmatprep.subr.mxu0 0.0
    %1493 = vmatpush1.msra.mxu0 0.0
    %1494 = vmatprep.subr.mxu0 0.0
    %1495 = vmatpush1.msra.mxu0 0.0
    %1496 = vmatprep.subr.mxu0 0.0
    %1497 = vmatpush1.msra.mxu0 0.0
    %1498 = vmatprep.subr.mxu0 0.0
    %1499 = vmatpush1.msra.mxu0 0.0
    %1500 = vmatprep.subr.mxu0 0.0
    %1501 = vmatpush1.msra.mxu0 0.0
    %1502 = vmatprep.subr.mxu0 0.0
    %1503 = vmatpush1.msra.mxu0 0.0
    %1504 = vmatprep.subr.mxu0 0.0
    %1505 = vmatpush1.msra.mxu0 0.0
    %1506 = vmatprep.mubr.f32.mxu0 0.0
    %1507 = vmatmul.mubr.f32.gmra.mrb[0].mxu0 %v1440
    %v1508 = vpop.f32.mrb[0].mxu0
    %v1509 = vadd.f32 %v87, %v1508
    %v1510 = vpop.f32.mrb[0].mxu0
    %1511 = vdwg.mxu0
    %1512 = vrot.lane.b32.xlu0 %v1258, 32
    %v1513 = vpop.permute.xlu0 %1512
    %v1515 = vsel %vm408, %v1513, 0.0
    %1517 = vrot.lane.b32.xlu0 %v1252, 96
    %v1518 = vpop.permute.xlu0 %1517
    %v1520 = vsel %vm408, %v1518, 0.0
    %v1522 = vsel %vm408, %v1439, 0.0
    %1524 = vrot.lane.b32.xlu0 %v1430, 96
    %v1525 = vpop.permute.xlu0 %1524
    %v1527 = vsel %vm408, %v1525, 0.0
    %v1528 = vsel %vm330, %v1509, 0.0
    %v1530 = vrot.slane %v1515, 7
    %v1533 = vrot.slane %v1520, 6
    %v1536 = vrot.slane %v1522, 6
    %v1539 = vrot.slane %v1527, 5
    %v1542 = vrot.slane %v1528, 4
    %v1544 = vsel %vm102, %v1530, %v1533
    %vm1545 = vcmask 1041408
    %v1546 = vsel %vm1545, %v1544, %v1536
    %vm1547 = vcmask 1042432
    %v1548 = vsel %vm1547, %v1546, %v1539
    %vm1549 = vcmask 1043456
    %v1550 = vsel %vm1549, %v1548, %v1542
    %v1551 = vsel %vm334, %v1550, 0.0
    %1552 = vst [vmem:[#allocation7] sm:$0xff] %v1551
    // Predicated region
    $region18: #{tpu_custom_call.1} parent=1 // pred_check
      _
    $region19: #{tpu_custom_call.1} parent=1 // pred_check_branch
      %1554 = sbr.rel (0) target = $region21
    $region20: #{tpu_custom_call.1} parent=1 // pred_region
      %s1556 = ssub.s32 128, 128
      %1557 = vsyncadd [#allocation4], %s1556
      %s1559 = sshll.u32 [#allocation7], 4
      %s1560 = int_to_ptr.vmem [resolvable:$true] %s1559
      %1562 = dma.vmem_to_hbm [thread:$0]  %s1560, 128, %s2, [#allocation4]
    $region21: #{tpu_custom_call.1} parent=1 // pred_fallthru
      _
    // Predicated region
    $region22: #{tpu_custom_call.1} parent=1 // pred_check
      _
    $region23: #{tpu_custom_call.1} parent=1 // pred_check_branch
      %1564 = sbr.rel (0) target = $region25
    $region24: #{tpu_custom_call.1} parent=1 // pred_region
      %1565 = dma.done [#allocation4], 128
    $region25: #{tpu_custom_call.1} parent=1 // pred_fallthru
      _
    %1566 = vsyncpa [#allocation3], 1
    %1567 = vsyncpa [#allocation6], 1
    %1568 = vsyncpa [#allocation4], 1

</llo_original>
